<compile_context>
chip_gen: v6e
topology: v6e:2x2x1
jax: 0.10.0
libtpu: 0.0.40
codegen_flags: <defaults>
</compile_context>

<pallas_src>
import jax
import jax.numpy as jnp
from jax.experimental import pallas as pl
from jax.experimental.pallas import tpu as pltpu

NEG_SLOPE = 0.01   # F.leaky_relu default
_TB_MAX = 256      # batch-tile rows per grid step


def _leaky_relu(x):
    return jnp.where(x > 0, x, NEG_SLOPE * x)


def critic_kernel(x_ref, w1_ref, w2_ref, aux_ref, b3_ref, out_ref, xpad_scr):
    # x_ref:    (TB, d)        f32   (d = C*H*W + 4, not lane-aligned)
    # w1_ref:   (d_pad, 1024)  bf16  (rows d..d_pad are zero)
    # w2_ref:   (1024, 512)    bf16
    # aux_ref:  (1, 2048)      f32   = [b1 (1024) | b2 (512) | w3 (512)]
    # b3_ref:   (1,)           f32   SMEM scalar
    # out_ref:  (TB, 1)        f32
    # xpad_scr: (TB, d_pad)    f32   VMEM scratch: lane-aligned staging for fc1
    d_in = x_ref.shape[1]

    # Zero the scratch once; later tiles only overwrite the first d_in columns,
    # so the pad columns stay zero (matching the zero-padded rows of w1).
    @pl.when(pl.program_id(0) == 0)
    def _():
        xpad_scr[...] = jnp.zeros_like(xpad_scr)

    xpad_scr[:, :d_in] = x_ref[...]

    b1 = aux_ref[:, 0:1024]
    b2 = aux_ref[:, 1024:1536]
    w3 = aux_ref[:, 1536:2048]

    # fc1: bf16 x bf16 on the MXU, f32 accumulation; epilogue in f32.
    h1 = jnp.dot(xpad_scr[...].astype(jnp.bfloat16), w1_ref[...],
                 preferred_element_type=jnp.float32) + b1
    h1 = _leaky_relu(h1)

    # fc2: cast activations to bf16 for the MXU, accumulate in f32.
    h2 = jnp.dot(h1.astype(jnp.bfloat16), w2_ref[...],
                 preferred_element_type=jnp.float32) + b2
    h2 = _leaky_relu(h2)

    # critic head (N=1): VPU multiply + XLU lane reduction instead of a
    # degenerate (512, 1) matmul.
    out_ref[...] = jnp.sum(h2 * w3, axis=-1, keepdims=True) + b3_ref[0]


def critic_forward(x, params):
    """x: (B, d) float32 (already-flattened A2C features).  params: init_params."""
    B, d = x.shape
    d_pad = params["w1_t"].shape[0]
    tb = min(_TB_MAX, B)
    grid = (pl.cdiv(B, tb),)

    return pl.pallas_call(
        critic_kernel,
        out_shape=jax.ShapeDtypeStruct((B, 1), jnp.float32),
        grid=grid,
        in_specs=[
            pl.BlockSpec((tb, d), lambda i: (i, 0)),            # x: batch-tiled
            pl.BlockSpec((d_pad, 1024), lambda i: (0, 0)),      # w1: VMEM-resident
            pl.BlockSpec((1024, 512), lambda i: (0, 0)),        # w2: VMEM-resident
            pl.BlockSpec((1, 2048), lambda i: (0, 0)),          # b1|b2|w3 pack
            pl.BlockSpec(memory_space=pltpu.MemorySpace.SMEM),  # b3 scalar
        ],
        out_specs=pl.BlockSpec((tb, 1), lambda i: (i, 0)),
        scratch_shapes=[pltpu.VMEM((tb, d_pad), jnp.float32)],
        compiler_params=pltpu.CompilerParams(
            dimension_semantics=("parallel",)),
    )(x, params["w1_t"], params["w2_t"], params["aux"], params["b3"])


def init_params(key, d):
    """Synthetic init matching the PyTorch __init__ semantics:
    fc1/fc2 weights ~ N(0, 0.1); biases and the critic layer use the default
    PyTorch Linear uniform(-1/sqrt(fan_in), 1/sqrt(fan_in)) bounds.
    Kernel tensors: weights pre-transposed to (in, out), bf16, fc1 K zero-padded
    to a multiple of 128; b1/b2/w3 packed into one f32 row; b3 scalar.
    Also keeps the original f32 tensors for the reference check."""
    ks = jax.random.split(key, 6)
    d_pad = ((d + 127) // 128) * 128

    w1 = 0.1 * jax.random.normal(ks[0], (1024, d), jnp.float32)       # (out, in)
    b1 = jax.random.uniform(ks[1], (1, 1024), jnp.float32,
                            -1.0 / jnp.sqrt(d), 1.0 / jnp.sqrt(d))
    w2 = 0.1 * jax.random.normal(ks[2], (512, 1024), jnp.float32)
    b2 = jax.random.uniform(ks[3], (1, 512), jnp.float32,
                            -1.0 / jnp.sqrt(1024.0), 1.0 / jnp.sqrt(1024.0))
    bound3 = 1.0 / jnp.sqrt(512.0)
    w3 = jax.random.uniform(ks[4], (1, 512), jnp.float32, -bound3, bound3)
    b3 = jax.random.uniform(ks[5], (1,), jnp.float32, -bound3, bound3)

    w1_t = jnp.zeros((d_pad, 1024), jnp.float32).at[:d, :].set(w1.T)  # pad K

    return {
        # kernel-side tensors
        "w1_t": w1_t.astype(jnp.bfloat16),              # (d_pad, 1024) bf16
        "w2_t": w2.T.astype(jnp.bfloat16),              # (1024, 512)  bf16
        "aux": jnp.concatenate([b1, b2, w3], axis=-1),  # (1, 2048)    f32
        "b3": b3,                                       # (1,)         f32 (SMEM)
        # f32 originals for reference checks
        "w1_f32": w1, "b1_f32": b1, "w2_f32": w2, "b2_f32": b2,
        "w3_f32": w3, "b3_f32": b3,
    }


def critic_reference_f32(x, params):
    """True f32 reference of the PyTorch module."""
    h1 = _leaky_relu(x @ params["w1_f32"].T + params["b1_f32"])
    h2 = _leaky_relu(h1 @ params["w2_f32"].T + params["b2_f32"])
    return jnp.sum(h2 * params["w3_f32"], axis=-1, keepdims=True) + params["b3_f32"]


def critic_reference_matched(x, params):
    """Pure-JAX path mirroring the kernel's bf16-weight / f32-accum dtype path."""
    B, d = x.shape
    d_pad = params["w1_t"].shape[0]
    x_p = jnp.zeros((B, d_pad), jnp.float32).at[:, :d].set(x)
    aux = params["aux"]
    b1, b2, w3 = aux[:, :1024], aux[:, 1024:1536], aux[:, 1536:]
    h1 = _leaky_relu(jnp.dot(x_p.astype(jnp.bfloat16), params["w1_t"],
                             preferred_element_type=jnp.float32) + b1)
    h2 = _leaky_relu(jnp.dot(h1.astype(jnp.bfloat16), params["w2_t"],
                             preferred_element_type=jnp.float32) + b2)
    return jnp.sum(h2 * w3, axis=-1, keepdims=True) + params["b3"]


if __name__ == "__main__":
    # Small shapes consistent with the module: input_shape = (C=4, H=4, W=4)
    #   d = 4*4*4 + 4 = 68, batch = 2.  Forward takes the already-flattened
    #   (B, d) feature vector (as the A2C agent feeds it).
    C, H, W = 4, 4, 4
    d = C * H * W + 4
    B = 2

    key = jax.random.PRNGKey(0)
    kx, kp = jax.random.split(key)
    x = jax.random.normal(kx, (B, d), jnp.float32)
    params = init_params(kp, d)

    out = jax.block_until_ready(critic_forward(x, params))
    assert out.shape == (B, 1)

    ref_matched = critic_reference_matched(x, params)   # same dtype path
    ref_f32 = critic_reference_f32(x, params)           # true f32 module
    assert jnp.allclose(out, ref_matched, atol=2e-2, rtol=2e-2), (out, ref_matched)
    assert jnp.allclose(out, ref_f32, atol=8e-2, rtol=8e-2), (out, ref_f32)

    print("KERNEL_OK")
</pallas_src>

<mosaic_0001>
module attributes {stable_mosaic.version = 11 : i64} {
  func.func @critic_kernel(%arg0: i32, %arg1: memref<2x68xf32, #tpu.memory_space<vmem>>, %arg2: memref<128x1024xbf16, #tpu.memory_space<vmem>>, %arg3: memref<1024x512xbf16, #tpu.memory_space<vmem>>, %arg4: memref<1x2048xf32, #tpu.memory_space<vmem>>, %arg5: memref<1xf32, #tpu.memory_space<smem>>, %arg6: memref<2x1xf32, #tpu.memory_space<vmem>>, %arg7: memref<2x128xf32, #tpu.memory_space<vmem>>) attributes {dimension_semantics = [#tpu.dimension_semantics<parallel>], iteration_bounds = array<i64: 1>, scalar_prefetch = 0 : i64, scratch_operands = 1 : i64, tpu.core_type = #tpu.core_type<tc>, window_params = [{transform_indices = @transform_0, window_bounds = array<i64: 2, 68>}, {pipeline_mode = #tpu.pipeline_mode<synchronous>, transform_indices = @transform_1, window_bounds = array<i64: 128, 1024>}, {pipeline_mode = #tpu.pipeline_mode<synchronous>, transform_indices = @transform_2, window_bounds = array<i64: 1024, 512>}, {pipeline_mode = #tpu.pipeline_mode<synchronous>, transform_indices = @transform_3, window_bounds = array<i64: 1, 2048>}, {transform_indices = @transform_4, window_bounds = array<i64: 1>}, {transform_indices = @transform_5, window_bounds = array<i64: 2, 1>}]} {
    %c0_i32 = arith.constant 0 : i32
    %0 = arith.cmpi eq, %arg0, %c0_i32 : i32
    %1 = arith.extui %0 : i1 to i32
    %c0_i32_0 = arith.constant 0 : i32
    %2 = arith.cmpi ne, %1, %c0_i32_0 : i32
    scf.if %2 {
      %cst_23 = arith.constant 0.000000e+00 : f32
      %37 = vector.broadcast %cst_23 : f32 to vector<2x128xf32>
      %c0_24 = arith.constant 0 : index
      %c0_25 = arith.constant 0 : index
      %38 = vector.load %arg7[%c0_24, %c0_25] : memref<2x128xf32, #tpu.memory_space<vmem>>, vector<2x128xf32>
      tpu.vector_store %arg7[%c0_24, %c0_25], %37 {strides = array<i32>} : memref<2x128xf32, #tpu.memory_space<vmem>>, vector<2x128xf32>,
    } else {
    }
    %c0 = arith.constant 0 : index
    %c0_1 = arith.constant 0 : index
    %3 = vector.load %arg1[%c0, %c0_1] : memref<2x68xf32, #tpu.memory_space<vmem>>, vector<2x68xf32>
    %c0_2 = arith.constant 0 : index
    %c0_3 = arith.constant 0 : index
    %4 = vector.load %arg7[%c0_2, %c0_3] : memref<2x128xf32, #tpu.memory_space<vmem>>, vector<2x68xf32>
    tpu.vector_store %arg7[%c0_2, %c0_3], %3 {strides = array<i32>} : memref<2x128xf32, #tpu.memory_space<vmem>>, vector<2x68xf32>,
    %c0_4 = arith.constant 0 : index
    %c0_5 = arith.constant 0 : index
    %5 = vector.load %arg4[%c0_4, %c0_5] : memref<1x2048xf32, #tpu.memory_space<vmem>>, vector<1x1024xf32>
    %c0_6 = arith.constant 0 : index
    %c1024 = arith.constant 1024 : index
    %6 = vector.load %arg4[%c0_6, %c1024] : memref<1x2048xf32, #tpu.memory_space<vmem>>, vector<1x512xf32>
    %c0_7 = arith.constant 0 : index
    %c1536 = arith.constant 1536 : index
    %7 = vector.load %arg4[%c0_7, %c1536] : memref<1x2048xf32, #tpu.memory_space<vmem>>, vector<1x512xf32>
    %c0_8 = arith.constant 0 : index
    %c0_9 = arith.constant 0 : index
    %8 = vector.load %arg7[%c0_8, %c0_9] : memref<2x128xf32, #tpu.memory_space<vmem>>, vector<2x128xf32>
    %9 = arith.truncf %8 : vector<2x128xf32> to vector<2x128xbf16>
    %c0_10 = arith.constant 0 : index
    %c0_11 = arith.constant 0 : index
    %10 = vector.load %arg2[%c0_10, %c0_11] : memref<128x1024xbf16, #tpu.memory_space<vmem>>, vector<128x1024xbf16>
    %cst = arith.constant dense<0.000000e+00> : vector<2x1024xf32>
    %11 = tpu.matmul %9, %10, %cst {dimension_numbers = #tpu.dot_dimension_numbers<[1], [0], [0], [1], [0, 0, 1, 1], [], []>} : vector<2x128xbf16>, vector<128x1024xbf16>, vector<2x1024xf32> -> vector<2x1024xf32>
    %12 = vector.broadcast %5 : vector<1x1024xf32> to vector<2x1024xf32>
    %13 = arith.addf %11, %12 : vector<2x1024xf32>
    %cst_12 = arith.constant 0.000000e+00 : f32
    %14 = vector.broadcast %cst_12 : f32 to vector<2x1024xf32>
    %15 = arith.cmpf ogt, %13, %14 : vector<2x1024xf32>
    %cst_13 = arith.constant 0.00999999977 : f32
    %16 = vector.broadcast %cst_13 : f32 to vector<2x1024xf32>
    %17 = arith.mulf %16, %13 : vector<2x1024xf32>
    %18 = arith.select %15, %13, %17 : vector<2x1024xi1>, vector<2x1024xf32>
    %19 = arith.truncf %18 : vector<2x1024xf32> to vector<2x1024xbf16>
    %c0_14 = arith.constant 0 : index
    %c0_15 = arith.constant 0 : index
    %20 = vector.load %arg3[%c0_14, %c0_15] : memref<1024x512xbf16, #tpu.memory_space<vmem>>, vector<1024x512xbf16>
    %cst_16 = arith.constant dense<0.000000e+00> : vector<2x512xf32>
    %21 = tpu.matmul %19, %20, %cst_16 {dimension_numbers = #tpu.dot_dimension_numbers<[1], [0], [0], [1], [0, 0, 1, 1], [], []>} : vector<2x1024xbf16>, vector<1024x512xbf16>, vector<2x512xf32> -> vector<2x512xf32>
    %22 = vector.broadcast %6 : vector<1x512xf32> to vector<2x512xf32>
    %23 = arith.addf %21, %22 : vector<2x512xf32>
    %cst_17 = arith.constant 0.000000e+00 : f32
    %24 = vector.broadcast %cst_17 : f32 to vector<2x512xf32>
    %25 = arith.cmpf ogt, %23, %24 : vector<2x512xf32>
    %cst_18 = arith.constant 0.00999999977 : f32
    %26 = vector.broadcast %cst_18 : f32 to vector<2x512xf32>
    %27 = arith.mulf %26, %23 : vector<2x512xf32>
    %28 = arith.select %25, %23, %27 : vector<2x512xi1>, vector<2x512xf32>
    %29 = vector.broadcast %7 : vector<1x512xf32> to vector<2x512xf32>
    %30 = arith.mulf %28, %29 : vector<2x512xf32>
    %cst_19 = arith.constant dense<0.000000e+00> : vector<2xf32>
    %31 = vector.multi_reduction <add>, %30, %cst_19 [1] : vector<2x512xf32> to vector<2xf32>
    %32 = vector.shape_cast %31 : vector<2xf32> to vector<2x1xf32>
    %c0_20 = arith.constant 0 : index
    %33 = memref.load %arg5[%c0_20] : memref<1xf32, #tpu.memory_space<smem>>
    %34 = vector.broadcast %33 : f32 to vector<2x1xf32>
    %35 = arith.addf %32, %34 : vector<2x1xf32>
    %c0_21 = arith.constant 0 : index
    %c0_22 = arith.constant 0 : index
    %36 = vector.load %arg6[%c0_21, %c0_22] : memref<2x1xf32, #tpu.memory_space<vmem>>, vector<2x1xf32>
    tpu.vector_store %arg6[%c0_21, %c0_22], %35 {strides = array<i32>} : memref<2x1xf32, #tpu.memory_space<vmem>>, vector<2x1xf32>,
    return
  }
  func.func @transform_0(%arg0: i32) -> (i32, i32) {
    %c0_i32 = arith.constant 0 : i32
    %c0_i32_0 = arith.constant 0 : i32
    return %arg0, %c0_i32 : i32, i32
  }
  func.func @transform_1(%arg0: i32) -> (i32, i32) {
    %c0_i32 = arith.constant 0 : i32
    %c0_i32_0 = arith.constant 0 : i32
    %c0_i32_1 = arith.constant 0 : i32
    return %c0_i32, %c0_i32_0 : i32, i32
  }
  func.func @transform_2(%arg0: i32) -> (i32, i32) {
    %c0_i32 = arith.constant 0 : i32
    %c0_i32_0 = arith.constant 0 : i32
    %c0_i32_1 = arith.constant 0 : i32
    return %c0_i32, %c0_i32_0 : i32, i32
  }
  func.func @transform_3(%arg0: i32) -> (i32, i32) {
    %c0_i32 = arith.constant 0 : i32
    %c0_i32_0 = arith.constant 0 : i32
    %c0_i32_1 = arith.constant 0 : i32
    return %c0_i32, %c0_i32_0 : i32, i32
  }
  func.func @transform_4(%arg0: i32) -> i32 {
    %c0_i32 = arith.constant 0 : i32
    %c0_i32_0 = arith.constant 0 : i32
    return %c0_i32 : i32
  }
  func.func @transform_5(%arg0: i32) -> (i32, i32) {
    %c0_i32 = arith.constant 0 : i32
    %c0_i32_0 = arith.constant 0 : i32
    return %arg0, %c0_i32 : i32, i32
  }
}

</mosaic_0001>

<llo_original>
// kernel: tpu_custom_call.1
$region0: #{tpu_custom_call.1}
  #allocation0 [shape = 'u32[]', space=smem, size = 0x4, offset = 0x4, fixed_abs, tag = 'smem constant byte address 0x4 - core index']
  #allocation1 [shape = 'u32[144,128]{1,0:T(1,128)}', space=vmem, size = 0x12000, scoped, tag = 'internal scratch']
  #allocation2 [shape = 'f32[2,128]{1,0:T(2,128)}', space=vmem, size = 0x400, scoped, tag = 'scratch operand']
  #allocation3 [shape = 'f32[1]{0:T(128)S(6)}', space=smem, size = 0x200, scoped, tag = 'scoped memory for tpu_custom_call.1']
  %s0 = inlined_call_operand.vmem [shape: f32[2,68], index: 0, kind: input, shape index: {}]
  %s1 = inlined_call_operand.hbm [shape: bf16[128,1024], index: 1, kind: input, shape index: {}]
  %s2 = inlined_call_operand.hbm [shape: bf16[1024,512], index: 2, kind: input, shape index: {}]
  %s3 = inlined_call_operand.hbm [shape: f32[1,2048], index: 3, kind: input, shape index: {}]
  %s4 = inlined_call_operand.<no memory space> [shape: f32[1], index: 4, kind: input, shape index: {}]
  %s5 = inlined_call_operand.vmem [shape: f32[2,1], index: 5, kind: output, shape index: {}]
  %s6 = sld [smem:[#allocation0]]
  $region46: #{tpu_custom_call.1} parent=0
    _
  %s8 = ssub.s32 1, %s6
  %s9 = scalar_select 0, %s8, %s6
  %10 = sst [smem:[#allocation3]] %s4
  $region1: #{tpu_custom_call.1} parent=0
    #allocation4 [shape = 'u8[262144]{0}', space=vmem, size = 0x40000, scoped, tag = 'input window, operand 1, single buffered']
    #allocation5 [shape = 's32[1]{0}', space=sflag, size = 0x4, scoped, tag = 'scoped memory for tpu_custom_call.1']
    #allocation6 [shape = 'u8[1048576]{0}', space=vmem, size = 0x100000, scoped, tag = 'input window, operand 2, single buffered']
    #allocation7 [shape = 's32[1]{0}', space=sflag, size = 0x4, scoped, tag = 'scoped memory for tpu_custom_call.1']
    #allocation8 [shape = 'u8[8192]{0}', space=vmem, size = 0x2000, scoped, tag = 'input window, operand 3, single buffered']
    %11 = vsyncpa [#allocation5], 0
    %12 = vsyncpa [#allocation7], 0
    // Predicated region
    $region2: #{tpu_custom_call.1} parent=1 // pred_check
      _
    $region3: #{tpu_custom_call.1} parent=1 // pred_check_branch
      %14 = sbr.rel (0) target = $region5
    $region4: #{tpu_custom_call.1} parent=1 // pred_region
      _
    $region5: #{tpu_custom_call.1} parent=1 // pred_fallthru
      _
    // Predicated region
    $region6: #{tpu_custom_call.1} parent=1 // pred_check
      _
    $region7: #{tpu_custom_call.1} parent=1 // pred_check_branch
      %16 = sbr.rel (0) target = $region9
    $region8: #{tpu_custom_call.1} parent=1 // pred_region
      %s18 = ssub.s32 8192, 8192
      %19 = vsyncadd [#allocation5], %s18
      %s20 = sshll.u32 [#allocation4], 4
      %s21 = int_to_ptr.vmem [resolvable:$true] %s20
      %26 = dma.hbm_to_vmem [thread:$0]  %s1, 8192, %s21, [#allocation5], 512, 512, 32
    $region9: #{tpu_custom_call.1} parent=1 // pred_fallthru
      _
    // Predicated region
    $region10: #{tpu_custom_call.1} parent=1 // pred_check
      _
    $region11: #{tpu_custom_call.1} parent=1 // pred_check_branch
      %28 = sbr.rel (0) target = $region13
    $region12: #{tpu_custom_call.1} parent=1 // pred_region
      %s30 = ssub.s32 32768, 32768
      %31 = vsyncadd [#allocation7], %s30
      %s32 = sshll.u32 [#allocation6], 4
      %s33 = int_to_ptr.vmem [resolvable:$true] %s32
      %38 = dma.hbm_to_vmem [thread:$0]  %s2, 32768, %s33, [#allocation7], 256, 256, 16
    $region13: #{tpu_custom_call.1} parent=1 // pred_fallthru
      _
    // Predicated region
    $region14: #{tpu_custom_call.1} parent=1 // pred_check
      _
    $region15: #{tpu_custom_call.1} parent=1 // pred_check_branch
      %40 = sbr.rel (0) target = $region17
    $region16: #{tpu_custom_call.1} parent=1 // pred_region
      %s42 = ssub.s32 256, 256
      %43 = vsyncadd [#allocation7], %s42
      %s45 = sshll.u32 [#allocation8], 4
      %s46 = int_to_ptr.vmem [resolvable:$true] %s45
      %48 = dma.hbm_to_vmem [thread:$0]  %s3, 256, %s46, [#allocation7]
    $region17: #{tpu_custom_call.1} parent=1 // pred_fallthru
      _
    // Predicated region
    $region18: #{tpu_custom_call.1} parent=1 // pred_check
      _
    $region19: #{tpu_custom_call.1} parent=1 // pred_check_branch
      %50 = sbr.rel (0) target = $region21
    $region20: #{tpu_custom_call.1} parent=1 // pred_region
      _
    $region21: #{tpu_custom_call.1} parent=1 // pred_fallthru
      _
    // Predicated region
    $region22: #{tpu_custom_call.1} parent=1 // pred_check
      _
    $region23: #{tpu_custom_call.1} parent=1 // pred_check_branch
      %52 = sbr.rel (0) target = $region25
    $region24: #{tpu_custom_call.1} parent=1 // pred_region
      %53 = dma.done [#allocation5], 8192
    $region25: #{tpu_custom_call.1} parent=1 // pred_fallthru
      _
    // Predicated region
    $region26: #{tpu_custom_call.1} parent=1 // pred_check
      _
    $region27: #{tpu_custom_call.1} parent=1 // pred_check_branch
      %55 = sbr.rel (0) target = $region29
    $region28: #{tpu_custom_call.1} parent=1 // pred_region
      %56 = dma.done [#allocation7], 32768
    $region29: #{tpu_custom_call.1} parent=1 // pred_fallthru
      _
    // Predicated region
    $region30: #{tpu_custom_call.1} parent=1 // pred_check
      _
    $region31: #{tpu_custom_call.1} parent=1 // pred_check_branch
      %58 = sbr.rel (0) target = $region33
    $region32: #{tpu_custom_call.1} parent=1 // pred_region
      %59 = dma.done [#allocation7], 256
    $region33: #{tpu_custom_call.1} parent=1 // pred_fallthru
      _
    %p61 = scmp.eq.s32.totalorder 0, 0
    // Predicated region
    $region34: #{tpu_custom_call.1} parent=1 // pred_check
      %p62 = pneg %p61
    $region35: #{tpu_custom_call.1} parent=1 // pred_check_branch
      %64 = sbr.rel (%p62) target = $region37
    $region36: #{tpu_custom_call.1} parent=1 // pred_region
      %65 = vst [vmem:[#allocation2] sm:$0x3] 0.0
    $region37: #{tpu_custom_call.1} parent=1 // pred_fallthru
      _
    %v66 = vld [vmem:[%s0] sm:$0x3]
    %vm67 = vcmask 549888
    %68 = vst.msk [vmem:[#allocation2] sm:$0x3] %vm67, %v66
    %v69 = vld [vmem:[#allocation8] sm:$0xff]
    %v70 = vld [vmem:[#allocation8 + $0x8] sm:$0xf]
    %v71 = vld [vmem:[#allocation8 + $0xc] sm:$0xf]
    %v72 = vld [vmem:[#allocation2] sm:$0x3]
    %v73 = vpack.c.bf16 %v72, %v72
    %v74 = vld [vmem:[#allocation4] sm:$0xff]
    %v75 = vld [vmem:[#allocation4 + $0x8] sm:$0xff]
    %v76 = vld [vmem:[#allocation4 + $0x10] sm:$0xff]
    %v77 = vld [vmem:[#allocation4 + $0x18] sm:$0xff]
    %v78 = vld [vmem:[#allocation4 + $0x20] sm:$0xff]
    %v79 = vld [vmem:[#allocation4 + $0x28] sm:$0xff]
    %v80 = vld [vmem:[#allocation4 + $0x30] sm:$0xff]
    %v81 = vld [vmem:[#allocation4 + $0x38] sm:$0xff]
    %v82 = vld [vmem:[#allocation4 + $0x40] sm:$0xff]
    %v83 = vld [vmem:[#allocation4 + $0x48] sm:$0xff]
    %v84 = vld [vmem:[#allocation4 + $0x50] sm:$0xff]
    %v85 = vld [vmem:[#allocation4 + $0x58] sm:$0xff]
    %v86 = vld [vmem:[#allocation4 + $0x60] sm:$0xff]
    %v87 = vld [vmem:[#allocation4 + $0x68] sm:$0xff]
    %v88 = vld [vmem:[#allocation4 + $0x70] sm:$0xff]
    %v89 = vld [vmem:[#allocation4 + $0x78] sm:$0xff]
    %v90 = vld [vmem:[#allocation4 + $0x80] sm:$0xff]
    %v91 = vld [vmem:[#allocation4 + $0x88] sm:$0xff]
    %v92 = vld [vmem:[#allocation4 + $0x90] sm:$0xff]
    %v93 = vld [vmem:[#allocation4 + $0x98] sm:$0xff]
    %v94 = vld [vmem:[#allocation4 + $0xa0] sm:$0xff]
    %v95 = vld [vmem:[#allocation4 + $0xa8] sm:$0xff]
    %v96 = vld [vmem:[#allocation4 + $0xb0] sm:$0xff]
    %v97 = vld [vmem:[#allocation4 + $0xb8] sm:$0xff]
    %v98 = vld [vmem:[#allocation4 + $0xc0] sm:$0xff]
    %v99 = vld [vmem:[#allocation4 + $0xc8] sm:$0xff]
    %v100 = vld [vmem:[#allocation4 + $0xd0] sm:$0xff]
    %v101 = vld [vmem:[#allocation4 + $0xd8] sm:$0xff]
    %v102 = vld [vmem:[#allocation4 + $0xe0] sm:$0xff]
    %v103 = vld [vmem:[#allocation4 + $0xe8] sm:$0xff]
    %v104 = vld [vmem:[#allocation4 + $0xf0] sm:$0xff]
    %v105 = vld [vmem:[#allocation4 + $0xf8] sm:$0xff]
    %v106 = vld [vmem:[#allocation4 + $0x100] sm:$0xff]
    %v107 = vld [vmem:[#allocation4 + $0x108] sm:$0xff]
    %v108 = vld [vmem:[#allocation4 + $0x110] sm:$0xff]
    %v109 = vld [vmem:[#allocation4 + $0x118] sm:$0xff]
    %v110 = vld [vmem:[#allocation4 + $0x120] sm:$0xff]
    %v111 = vld [vmem:[#allocation4 + $0x128] sm:$0xff]
    %v112 = vld [vmem:[#allocation4 + $0x130] sm:$0xff]
    %v113 = vld [vmem:[#allocation4 + $0x138] sm:$0xff]
    %v114 = vld [vmem:[#allocation4 + $0x140] sm:$0xff]
    %v115 = vld [vmem:[#allocation4 + $0x148] sm:$0xff]
    %v116 = vld [vmem:[#allocation4 + $0x150] sm:$0xff]
    %v117 = vld [vmem:[#allocation4 + $0x158] sm:$0xff]
    %v118 = vld [vmem:[#allocation4 + $0x160] sm:$0xff]
    %v119 = vld [vmem:[#allocation4 + $0x168] sm:$0xff]
    %v120 = vld [vmem:[#allocation4 + $0x170] sm:$0xff]
    %v121 = vld [vmem:[#allocation4 + $0x178] sm:$0xff]
    %v122 = vld [vmem:[#allocation4 + $0x180] sm:$0xff]
    %v123 = vld [vmem:[#allocation4 + $0x188] sm:$0xff]
    %v124 = vld [vmem:[#allocation4 + $0x190] sm:$0xff]
    %v125 = vld [vmem:[#allocation4 + $0x198] sm:$0xff]
    %v126 = vld [vmem:[#allocation4 + $0x1a0] sm:$0xff]
    %v127 = vld [vmem:[#allocation4 + $0x1a8] sm:$0xff]
    %v128 = vld [vmem:[#allocation4 + $0x1b0] sm:$0xff]
    %v129 = vld [vmem:[#allocation4 + $0x1b8] sm:$0xff]
    %v130 = vld [vmem:[#allocation4 + $0x1c0] sm:$0xff]
    %v131 = vld [vmem:[#allocation4 + $0x1c8] sm:$0xff]
    %v132 = vld [vmem:[#allocation4 + $0x1d0] sm:$0xff]
    %v133 = vld [vmem:[#allocation4 + $0x1d8] sm:$0xff]
    %v134 = vld [vmem:[#allocation4 + $0x1e0] sm:$0xff]
    %v135 = vld [vmem:[#allocation4 + $0x1e8] sm:$0xff]
    %v136 = vld [vmem:[#allocation4 + $0x1f0] sm:$0xff]
    %v137 = vld [vmem:[#allocation4 + $0x1f8] sm:$0xff]
    %v139 = vlaneseq
    %v140 = vshrl.u32 %v139, 7
    %v141 = vsub.s32 0, %v140
    %v142 = vrot.slane %v69, %v141
    %v143 = vlaneseq
    %v144 = vshrl.u32 %v143, 7
    %v145 = vsub.s32 1, %v144
    %v146 = vrot.slane %v69, %v145
    %v147 = vlaneseq
    %v148 = vshrl.u32 %v147, 7
    %v149 = vsub.s32 2, %v148
    %v150 = vrot.slane %v69, %v149
    %v151 = vlaneseq
    %v152 = vshrl.u32 %v151, 7
    %v153 = vsub.s32 3, %v152
    %v154 = vrot.slane %v69, %v153
    %v155 = vlaneseq
    %v156 = vshrl.u32 %v155, 7
    %v157 = vsub.s32 4, %v156
    %v158 = vrot.slane %v69, %v157
    %v159 = vlaneseq
    %v160 = vshrl.u32 %v159, 7
    %v161 = vsub.s32 5, %v160
    %v162 = vrot.slane %v69, %v161
    %v163 = vlaneseq
    %v164 = vshrl.u32 %v163, 7
    %v165 = vsub.s32 6, %v164
    %v166 = vrot.slane %v69, %v165
    %v167 = vlaneseq
    %v168 = vshrl.u32 %v167, 7
    %v169 = vsub.s32 7, %v168
    %v170 = vrot.slane %v69, %v169
    %v243 = vunpack.c.l.b16 %v74
    %v244 = vunpack.c.h.b16 %v74
    %v245 = vunpack.c.l.b16 %v75
    %v246 = vunpack.c.h.b16 %v75
    %v247 = vunpack.c.l.b16 %v76
    %v248 = vunpack.c.h.b16 %v76
    %v249 = vunpack.c.l.b16 %v77
    %v250 = vunpack.c.h.b16 %v77
    %v251 = vunpack.c.l.b16 %v78
    %v252 = vunpack.c.h.b16 %v78
    %v253 = vunpack.c.l.b16 %v79
    %v254 = vunpack.c.h.b16 %v79
    %v255 = vunpack.c.l.b16 %v80
    %v256 = vunpack.c.h.b16 %v80
    %v257 = vunpack.c.l.b16 %v81
    %v258 = vunpack.c.h.b16 %v81
    %v259 = vunpack.c.l.b16 %v82
    %v260 = vunpack.c.h.b16 %v82
    %v261 = vunpack.c.l.b16 %v83
    %v262 = vunpack.c.h.b16 %v83
    %v263 = vunpack.c.l.b16 %v84
    %v264 = vunpack.c.h.b16 %v84
    %v265 = vunpack.c.l.b16 %v85
    %v266 = vunpack.c.h.b16 %v85
    %v267 = vunpack.c.l.b16 %v86
    %v268 = vunpack.c.h.b16 %v86
    %v269 = vunpack.c.l.b16 %v87
    %v270 = vunpack.c.h.b16 %v87
    %v271 = vunpack.c.l.b16 %v88
    %v272 = vunpack.c.h.b16 %v88
    %v273 = vunpack.c.l.b16 %v89
    %v274 = vunpack.c.h.b16 %v89
    %v275 = vunpack.c.l.b16 %v90
    %v276 = vunpack.c.h.b16 %v90
    %v277 = vunpack.c.l.b16 %v91
    %v278 = vunpack.c.h.b16 %v91
    %v279 = vunpack.c.l.b16 %v92
    %v280 = vunpack.c.h.b16 %v92
    %v281 = vunpack.c.l.b16 %v93
    %v282 = vunpack.c.h.b16 %v93
    %v283 = vunpack.c.l.b16 %v94
    %v284 = vunpack.c.h.b16 %v94
    %v285 = vunpack.c.l.b16 %v95
    %v286 = vunpack.c.h.b16 %v95
    %v287 = vunpack.c.l.b16 %v96
    %v288 = vunpack.c.h.b16 %v96
    %v289 = vunpack.c.l.b16 %v97
    %v290 = vunpack.c.h.b16 %v97
    %v291 = vunpack.c.l.b16 %v98
    %v292 = vunpack.c.h.b16 %v98
    %v293 = vunpack.c.l.b16 %v99
    %v294 = vunpack.c.h.b16 %v99
    %v295 = vunpack.c.l.b16 %v100
    %v296 = vunpack.c.h.b16 %v100
    %v297 = vunpack.c.l.b16 %v101
    %v298 = vunpack.c.h.b16 %v101
    %v299 = vunpack.c.l.b16 %v102
    %v300 = vunpack.c.h.b16 %v102
    %v301 = vunpack.c.l.b16 %v103
    %v302 = vunpack.c.h.b16 %v103
    %v303 = vunpack.c.l.b16 %v104
    %v304 = vunpack.c.h.b16 %v104
    %v305 = vunpack.c.l.b16 %v105
    %v306 = vunpack.c.h.b16 %v105
    %v307 = vunpack.c.l.b16 %v106
    %v308 = vunpack.c.h.b16 %v106
    %v309 = vunpack.c.l.b16 %v107
    %v310 = vunpack.c.h.b16 %v107
    %v311 = vunpack.c.l.b16 %v108
    %v312 = vunpack.c.h.b16 %v108
    %v313 = vunpack.c.l.b16 %v109
    %v314 = vunpack.c.h.b16 %v109
    %v315 = vunpack.c.l.b16 %v110
    %v316 = vunpack.c.h.b16 %v110
    %v317 = vunpack.c.l.b16 %v111
    %v318 = vunpack.c.h.b16 %v111
    %v319 = vunpack.c.l.b16 %v112
    %v320 = vunpack.c.h.b16 %v112
    %v321 = vunpack.c.l.b16 %v113
    %v322 = vunpack.c.h.b16 %v113
    %v323 = vunpack.c.l.b16 %v114
    %v324 = vunpack.c.h.b16 %v114
    %v325 = vunpack.c.l.b16 %v115
    %v326 = vunpack.c.h.b16 %v115
    %v327 = vunpack.c.l.b16 %v116
    %v328 = vunpack.c.h.b16 %v116
    %v329 = vunpack.c.l.b16 %v117
    %v330 = vunpack.c.h.b16 %v117
    %v331 = vunpack.c.l.b16 %v118
    %v332 = vunpack.c.h.b16 %v118
    %v333 = vunpack.c.l.b16 %v119
    %v334 = vunpack.c.h.b16 %v119
    %v335 = vunpack.c.l.b16 %v120
    %v336 = vunpack.c.h.b16 %v120
    %v337 = vunpack.c.l.b16 %v121
    %v338 = vunpack.c.h.b16 %v121
    %v339 = vunpack.c.l.b16 %v122
    %v340 = vunpack.c.h.b16 %v122
    %v341 = vunpack.c.l.b16 %v123
    %v342 = vunpack.c.h.b16 %v123
    %v343 = vunpack.c.l.b16 %v124
    %v344 = vunpack.c.h.b16 %v124
    %v345 = vunpack.c.l.b16 %v125
    %v346 = vunpack.c.h.b16 %v125
    %v347 = vunpack.c.l.b16 %v126
    %v348 = vunpack.c.h.b16 %v126
    %v349 = vunpack.c.l.b16 %v127
    %v350 = vunpack.c.h.b16 %v127
    %v351 = vunpack.c.l.b16 %v128
    %v352 = vunpack.c.h.b16 %v128
    %v353 = vunpack.c.l.b16 %v129
    %v354 = vunpack.c.h.b16 %v129
    %v355 = vunpack.c.l.b16 %v130
    %v356 = vunpack.c.h.b16 %v130
    %v357 = vunpack.c.l.b16 %v131
    %v358 = vunpack.c.h.b16 %v131
    %v359 = vunpack.c.l.b16 %v132
    %v360 = vunpack.c.h.b16 %v132
    %v361 = vunpack.c.l.b16 %v133
    %v362 = vunpack.c.h.b16 %v133
    %v363 = vunpack.c.l.b16 %v134
    %v364 = vunpack.c.h.b16 %v134
    %v365 = vunpack.c.l.b16 %v135
    %v366 = vunpack.c.h.b16 %v135
    %v367 = vunpack.c.l.b16 %v136
    %v368 = vunpack.c.h.b16 %v136
    %v369 = vunpack.c.l.b16 %v137
    %v370 = vunpack.c.h.b16 %v137
    %v371 = vpack.c.b16 %v251, %v243
    %v372 = vpack.c.b16 %v252, %v244
    %v373 = vpack.c.b16 %v253, %v245
    %v374 = vpack.c.b16 %v254, %v246
    %v375 = vpack.c.b16 %v255, %v247
    %v376 = vpack.c.b16 %v256, %v248
    %v377 = vpack.c.b16 %v257, %v249
    %v378 = vpack.c.b16 %v258, %v250
    %v379 = vpack.c.b16 %v267, %v259
    %v380 = vpack.c.b16 %v268, %v260
    %v381 = vpack.c.b16 %v269, %v261
    %v382 = vpack.c.b16 %v270, %v262
    %v383 = vpack.c.b16 %v271, %v263
    %v384 = vpack.c.b16 %v272, %v264
    %v385 = vpack.c.b16 %v273, %v265
    %v386 = vpack.c.b16 %v274, %v266
    %v387 = vpack.c.b16 %v283, %v275
    %v388 = vpack.c.b16 %v284, %v276
    %v389 = vpack.c.b16 %v285, %v277
    %v390 = vpack.c.b16 %v286, %v278
    %v391 = vpack.c.b16 %v287, %v279
    %v392 = vpack.c.b16 %v288, %v280
    %v393 = vpack.c.b16 %v289, %v281
    %v394 = vpack.c.b16 %v290, %v282
    %v395 = vpack.c.b16 %v299, %v291
    %v396 = vpack.c.b16 %v300, %v292
    %v397 = vpack.c.b16 %v301, %v293
    %v398 = vpack.c.b16 %v302, %v294
    %v399 = vpack.c.b16 %v303, %v295
    %v400 = vpack.c.b16 %v304, %v296
    %v401 = vpack.c.b16 %v305, %v297
    %v402 = vpack.c.b16 %v306, %v298
    %v403 = vpack.c.b16 %v315, %v307
    %v404 = vpack.c.b16 %v316, %v308
    %v405 = vpack.c.b16 %v317, %v309
    %v406 = vpack.c.b16 %v318, %v310
    %v407 = vpack.c.b16 %v319, %v311
    %v408 = vpack.c.b16 %v320, %v312
    %v409 = vpack.c.b16 %v321, %v313
    %v410 = vpack.c.b16 %v322, %v314
    %v411 = vpack.c.b16 %v331, %v323
    %v412 = vpack.c.b16 %v332, %v324
    %v413 = vpack.c.b16 %v333, %v325
    %v414 = vpack.c.b16 %v334, %v326
    %v415 = vpack.c.b16 %v335, %v327
    %v416 = vpack.c.b16 %v336, %v328
    %v417 = vpack.c.b16 %v337, %v329
    %v418 = vpack.c.b16 %v338, %v330
    %v419 = vpack.c.b16 %v347, %v339
    %v420 = vpack.c.b16 %v348, %v340
    %v421 = vpack.c.b16 %v349, %v341
    %v422 = vpack.c.b16 %v350, %v342
    %v423 = vpack.c.b16 %v351, %v343
    %v424 = vpack.c.b16 %v352, %v344
    %v425 = vpack.c.b16 %v353, %v345
    %v426 = vpack.c.b16 %v354, %v346
    %v427 = vpack.c.b16 %v363, %v355
    %v428 = vpack.c.b16 %v364, %v356
    %v429 = vpack.c.b16 %v365, %v357
    %v430 = vpack.c.b16 %v366, %v358
    %v431 = vpack.c.b16 %v367, %v359
    %v432 = vpack.c.b16 %v368, %v360
    %v433 = vpack.c.b16 %v369, %v361
    %v434 = vpack.c.b16 %v370, %v362
    %499 = vmatprep.subr.bf16.mxu0 %v428
    %500 = vmatpush1.bf16.msra.mxu0 %v427
    %501 = vmatprep.subr.bf16.mxu0 %v420
    %502 = vmatpush1.bf16.msra.mxu0 %v419
    %503 = vmatprep.subr.bf16.mxu0 %v412
    %504 = vmatpush1.bf16.msra.mxu0 %v411
    %505 = vmatprep.subr.bf16.mxu0 %v404
    %506 = vmatpush1.bf16.msra.mxu0 %v403
    %507 = vmatprep.subr.bf16.mxu0 %v396
    %508 = vmatpush1.bf16.msra.mxu0 %v395
    %509 = vmatprep.subr.bf16.mxu0 %v388
    %510 = vmatpush1.bf16.msra.mxu0 %v387
    %511 = vmatprep.subr.bf16.mxu0 %v380
    %512 = vmatpush1.bf16.msra.mxu0 %v379
    %513 = vmatprep.subr.bf16.mxu0 %v372
    %514 = vmatpush1.bf16.msra.mxu0 %v371
    %515 = vmatprep.subr.bf16.mxu0 0
    %516 = vmatpush2.bf16.msra.mxu0 0
    %517 = vmatprep.subr.bf16.mxu0 0
    %518 = vmatpush2.bf16.msra.mxu0 0
    %519 = vmatprep.subr.bf16.mxu0 0
    %520 = vmatpush2.bf16.msra.mxu0 0
    %521 = vmatprep.subr.bf16.mxu0 0
    %522 = vmatpush2.bf16.msra.mxu0 0
    %523 = vmatprep.subr.bf16.mxu0 0
    %524 = vmatpush2.bf16.msra.mxu0 0
    %525 = vmatprep.subr.bf16.mxu0 0
    %526 = vmatpush2.bf16.msra.mxu0 0
    %527 = vmatprep.subr.bf16.mxu0 0
    %528 = vmatpush2.bf16.msra.mxu0 0
    %529 = vmatprep.subr.bf16.mxu0 0
    %530 = vmatpush2.bf16.msra.mxu0 0
    %531 = vmatprep.mubr.bf16.mxu0 0
    %532 = vmatmul.mubr.bf16.gmra.mxu0 %v73
    %v533 = vpop.f32.mrf.mxu0
    %v534 = vadd.f32 %v142, %v533
    %v535 = vpop.f32.mrf.mxu0
    %v536 = vadd.f32 %v146, %v535
    %v537 = vpop.f32.mrf.mxu0
    %v538 = vpop.f32.mrf.mxu0
    %539 = vdwg.mxu0
    %540 = vmatprep.subr.bf16.mxu0 %v430
    %541 = vmatpush1.bf16.msra.mxu0 %v429
    %542 = vmatprep.subr.bf16.mxu0 %v422
    %543 = vmatpush1.bf16.msra.mxu0 %v421
    %544 = vmatprep.subr.bf16.mxu0 %v414
    %545 = vmatpush1.bf16.msra.mxu0 %v413
    %546 = vmatprep.subr.bf16.mxu0 %v406
    %547 = vmatpush1.bf16.msra.mxu0 %v405
    %548 = vmatprep.subr.bf16.mxu0 %v398
    %549 = vmatpush1.bf16.msra.mxu0 %v397
    %550 = vmatprep.subr.bf16.mxu0 %v390
    %551 = vmatpush1.bf16.msra.mxu0 %v389
    %552 = vmatprep.subr.bf16.mxu0 %v382
    %553 = vmatpush1.bf16.msra.mxu0 %v381
    %554 = vmatprep.subr.bf16.mxu0 %v374
    %555 = vmatpush1.bf16.msra.mxu0 %v373
    %556 = vmatprep.subr.bf16.mxu0 0
    %557 = vmatpush2.bf16.msra.mxu0 0
    %558 = vmatprep.subr.bf16.mxu0 0
    %559 = vmatpush2.bf16.msra.mxu0 0
    %560 = vmatprep.subr.bf16.mxu0 0
    %561 = vmatpush2.bf16.msra.mxu0 0
    %562 = vmatprep.subr.bf16.mxu0 0
    %563 = vmatpush2.bf16.msra.mxu0 0
    %564 = vmatprep.subr.bf16.mxu0 0
    %565 = vmatpush2.bf16.msra.mxu0 0
    %566 = vmatprep.subr.bf16.mxu0 0
    %567 = vmatpush2.bf16.msra.mxu0 0
    %568 = vmatprep.subr.bf16.mxu0 0
    %569 = vmatpush2.bf16.msra.mxu0 0
    %570 = vmatprep.subr.bf16.mxu0 0
    %571 = vmatpush2.bf16.msra.mxu0 0
    %572 = vmatprep.mubr.bf16.mxu0 0
    %573 = vmatmul.mubr.bf16.gmra.mxu0 %v73
    %v574 = vpop.f32.mrf.mxu0
    %v575 = vadd.f32 %v150, %v574
    %v576 = vpop.f32.mrf.mxu0
    %v577 = vadd.f32 %v154, %v576
    %v578 = vpop.f32.mrf.mxu0
    %v579 = vpop.f32.mrf.mxu0
    %580 = vdwg.mxu0
    %581 = vmatprep.subr.bf16.mxu0 %v432
    %582 = vmatpush1.bf16.msra.mxu0 %v431
    %583 = vmatprep.subr.bf16.mxu0 %v424
    %584 = vmatpush1.bf16.msra.mxu0 %v423
    %585 = vmatprep.subr.bf16.mxu0 %v416
    %586 = vmatpush1.bf16.msra.mxu0 %v415
    %587 = vmatprep.subr.bf16.mxu0 %v408
    %588 = vmatpush1.bf16.msra.mxu0 %v407
    %589 = vmatprep.subr.bf16.mxu0 %v400
    %590 = vmatpush1.bf16.msra.mxu0 %v399
    %591 = vmatprep.subr.bf16.mxu0 %v392
    %592 = vmatpush1.bf16.msra.mxu0 %v391
    %593 = vmatprep.subr.bf16.mxu0 %v384
    %594 = vmatpush1.bf16.msra.mxu0 %v383
    %595 = vmatprep.subr.bf16.mxu0 %v376
    %596 = vmatpush1.bf16.msra.mxu0 %v375
    %597 = vmatprep.subr.bf16.mxu0 0
    %598 = vmatpush2.bf16.msra.mxu0 0
    %599 = vmatprep.subr.bf16.mxu0 0
    %600 = vmatpush2.bf16.msra.mxu0 0
    %601 = vmatprep.subr.bf16.mxu0 0
    %602 = vmatpush2.bf16.msra.mxu0 0
    %603 = vmatprep.subr.bf16.mxu0 0
    %604 = vmatpush2.bf16.msra.mxu0 0
    %605 = vmatprep.subr.bf16.mxu0 0
    %606 = vmatpush2.bf16.msra.mxu0 0
    %607 = vmatprep.subr.bf16.mxu0 0
    %608 = vmatpush2.bf16.msra.mxu0 0
    %609 = vmatprep.subr.bf16.mxu0 0
    %610 = vmatpush2.bf16.msra.mxu0 0
    %611 = vmatprep.subr.bf16.mxu0 0
    %612 = vmatpush2.bf16.msra.mxu0 0
    %613 = vmatprep.mubr.bf16.mxu0 0
    %614 = vmatmul.mubr.bf16.gmra.mxu0 %v73
    %v615 = vpop.f32.mrf.mxu0
    %v616 = vadd.f32 %v158, %v615
    %v617 = vpop.f32.mrf.mxu0
    %v618 = vadd.f32 %v162, %v617
    %v619 = vpop.f32.mrf.mxu0
    %v620 = vpop.f32.mrf.mxu0
    %621 = vdwg.mxu0
    %622 = vmatprep.subr.bf16.mxu0 %v434
    %623 = vmatpush1.bf16.msra.mxu0 %v433
    %624 = vmatprep.subr.bf16.mxu0 %v426
    %625 = vmatpush1.bf16.msra.mxu0 %v425
    %626 = vmatprep.subr.bf16.mxu0 %v418
    %627 = vmatpush1.bf16.msra.mxu0 %v417
    %628 = vmatprep.subr.bf16.mxu0 %v410
    %629 = vmatpush1.bf16.msra.mxu0 %v409
    %630 = vmatprep.subr.bf16.mxu0 %v402
    %631 = vmatpush1.bf16.msra.mxu0 %v401
    %632 = vmatprep.subr.bf16.mxu0 %v394
    %633 = vmatpush1.bf16.msra.mxu0 %v393
    %634 = vmatprep.subr.bf16.mxu0 %v386
    %635 = vmatpush1.bf16.msra.mxu0 %v385
    %636 = vmatprep.subr.bf16.mxu0 %v378
    %637 = vmatpush1.bf16.msra.mxu0 %v377
    %638 = vmatprep.subr.bf16.mxu0 0
    %639 = vmatpush2.bf16.msra.mxu0 0
    %640 = vmatprep.subr.bf16.mxu0 0
    %641 = vmatpush2.bf16.msra.mxu0 0
    %642 = vmatprep.subr.bf16.mxu0 0
    %643 = vmatpush2.bf16.msra.mxu0 0
    %644 = vmatprep.subr.bf16.mxu0 0
    %645 = vmatpush2.bf16.msra.mxu0 0
    %646 = vmatprep.subr.bf16.mxu0 0
    %647 = vmatpush2.bf16.msra.mxu0 0
    %648 = vmatprep.subr.bf16.mxu0 0
    %649 = vmatpush2.bf16.msra.mxu0 0
    %650 = vmatprep.subr.bf16.mxu0 0
    %651 = vmatpush2.bf16.msra.mxu0 0
    %652 = vmatprep.subr.bf16.mxu0 0
    %653 = vmatpush2.bf16.msra.mxu0 0
    %654 = vmatprep.mubr.bf16.mxu0 0
    %655 = vmatmul.mubr.bf16.gmra.mxu0 %v73
    %v656 = vpop.f32.mrf.mxu0
    %v657 = vadd.f32 %v166, %v656
    %v658 = vpop.f32.mrf.mxu0
    %v659 = vadd.f32 %v170, %v658
    %v660 = vpop.f32.mrf.mxu0
    %v661 = vpop.f32.mrf.mxu0
    %662 = vdwg.mxu0
    %vm663 = vcmp.gt.f32.partialorder %v534, 0.0
    %vm664 = vcmp.gt.f32.partialorder %v536, 0.0
    %vm665 = vcmp.gt.f32.partialorder %v575, 0.0
    %vm666 = vcmp.gt.f32.partialorder %v577, 0.0
    %vm667 = vcmp.gt.f32.partialorder %v616, 0.0
    %vm668 = vcmp.gt.f32.partialorder %v618, 0.0
    %vm669 = vcmp.gt.f32.partialorder %v657, 0.0
    %vm670 = vcmp.gt.f32.partialorder %v659, 0.0
    %v671 = vmul.f32 %v534, 0.01
    %v672 = vmul.f32 %v536, 0.01
    %v673 = vmul.f32 %v575, 0.01
    %v674 = vmul.f32 %v577, 0.01
    %v675 = vmul.f32 %v616, 0.01
    %v676 = vmul.f32 %v618, 0.01
    %v677 = vmul.f32 %v657, 0.01
    %v678 = vmul.f32 %v659, 0.01
    %v679 = vsel %vm663, %v534, %v671
    %v680 = vsel %vm664, %v536, %v672
    %v681 = vsel %vm665, %v575, %v673
    %v682 = vsel %vm666, %v577, %v674
    %v683 = vsel %vm667, %v616, %v675
    %v684 = vsel %vm668, %v618, %v676
    %v685 = vsel %vm669, %v657, %v677
    %v686 = vsel %vm670, %v659, %v678
    %v687 = vpack.c.bf16 %v679, %v679
    %v688 = vpack.c.bf16 %v680, %v680
    %v689 = vpack.c.bf16 %v681, %v681
    %v690 = vpack.c.bf16 %v682, %v682
    %v691 = vpack.c.bf16 %v683, %v683
    %v692 = vpack.c.bf16 %v684, %v684
    %v693 = vpack.c.bf16 %v685, %v685
    %v694 = vpack.c.bf16 %v686, %v686
    %v695 = vld [vmem:[#allocation6] sm:$0xff]
    %v696 = vld [vmem:[#allocation6 + $0x8] sm:$0xff]
    %v697 = vld [vmem:[#allocation6 + $0x10] sm:$0xff]
    %v698 = vld [vmem:[#allocation6 + $0x18] sm:$0xff]
    %v699 = vld [vmem:[#allocation6 + $0x20] sm:$0xff]
    %v700 = vld [vmem:[#allocation6 + $0x28] sm:$0xff]
    %v701 = vld [vmem:[#allocation6 + $0x30] sm:$0xff]
    %v702 = vld [vmem:[#allocation6 + $0x38] sm:$0xff]
    %v703 = vld [vmem:[#allocation6 + $0x40] sm:$0xff]
    %v704 = vld [vmem:[#allocation6 + $0x48] sm:$0xff]
    %v705 = vld [vmem:[#allocation6 + $0x50] sm:$0xff]
    %v706 = vld [vmem:[#allocation6 + $0x58] sm:$0xff]
    %v707 = vld [vmem:[#allocation6 + $0x60] sm:$0xff]
    %v708 = vld [vmem:[#allocation6 + $0x68] sm:$0xff]
    %v709 = vld [vmem:[#allocation6 + $0x70] sm:$0xff]
    %v710 = vld [vmem:[#allocation6 + $0x78] sm:$0xff]
    %v711 = vld [vmem:[#allocation6 + $0x80] sm:$0xff]
    %v712 = vld [vmem:[#allocation6 + $0x88] sm:$0xff]
    %v713 = vld [vmem:[#allocation6 + $0x90] sm:$0xff]
    %v714 = vld [vmem:[#allocation6 + $0x98] sm:$0xff]
    %v715 = vld [vmem:[#allocation6 + $0xa0] sm:$0xff]
    %v716 = vld [vmem:[#allocation6 + $0xa8] sm:$0xff]
    %v717 = vld [vmem:[#allocation6 + $0xb0] sm:$0xff]
    %v718 = vld [vmem:[#allocation6 + $0xb8] sm:$0xff]
    %v719 = vld [vmem:[#allocation6 + $0xc0] sm:$0xff]
    %v720 = vld [vmem:[#allocation6 + $0xc8] sm:$0xff]
    %v721 = vld [vmem:[#allocation6 + $0xd0] sm:$0xff]
    %v722 = vld [vmem:[#allocation6 + $0xd8] sm:$0xff]
    %v723 = vld [vmem:[#allocation6 + $0xe0] sm:$0xff]
    %v724 = vld [vmem:[#allocation6 + $0xe8] sm:$0xff]
    %v725 = vld [vmem:[#allocation6 + $0xf0] sm:$0xff]
    %v726 = vld [vmem:[#allocation6 + $0xf8] sm:$0xff]
    %v727 = vld [vmem:[#allocation6 + $0x100] sm:$0xff]
    %v728 = vld [vmem:[#allocation6 + $0x108] sm:$0xff]
    %v729 = vld [vmem:[#allocation6 + $0x110] sm:$0xff]
    %v730 = vld [vmem:[#allocation6 + $0x118] sm:$0xff]
    %v731 = vld [vmem:[#allocation6 + $0x120] sm:$0xff]
    %v732 = vld [vmem:[#allocation6 + $0x128] sm:$0xff]
    %v733 = vld [vmem:[#allocation6 + $0x130] sm:$0xff]
    %v734 = vld [vmem:[#allocation6 + $0x138] sm:$0xff]
    %v735 = vld [vmem:[#allocation6 + $0x140] sm:$0xff]
    %v736 = vld [vmem:[#allocation6 + $0x148] sm:$0xff]
    %v737 = vld [vmem:[#allocation6 + $0x150] sm:$0xff]
    %v738 = vld [vmem:[#allocation6 + $0x158] sm:$0xff]
    %v739 = vld [vmem:[#allocation6 + $0x160] sm:$0xff]
    %v740 = vld [vmem:[#allocation6 + $0x168] sm:$0xff]
    %v741 = vld [vmem:[#allocation6 + $0x170] sm:$0xff]
    %v742 = vld [vmem:[#allocation6 + $0x178] sm:$0xff]
    %v743 = vld [vmem:[#allocation6 + $0x180] sm:$0xff]
    %v744 = vld [vmem:[#allocation6 + $0x188] sm:$0xff]
    %v745 = vld [vmem:[#allocation6 + $0x190] sm:$0xff]
    %v746 = vld [vmem:[#allocation6 + $0x198] sm:$0xff]
    %v747 = vld [vmem:[#allocation6 + $0x1a0] sm:$0xff]
    %v748 = vld [vmem:[#allocation6 + $0x1a8] sm:$0xff]
    %v749 = vld [vmem:[#allocation6 + $0x1b0] sm:$0xff]
    %v750 = vld [vmem:[#allocation6 + $0x1b8] sm:$0xff]
    %v751 = vld [vmem:[#allocation6 + $0x1c0] sm:$0xff]
    %v752 = vld [vmem:[#allocation6 + $0x1c8] sm:$0xff]
    %v753 = vld [vmem:[#allocation6 + $0x1d0] sm:$0xff]
    %v754 = vld [vmem:[#allocation6 + $0x1d8] sm:$0xff]
    %v755 = vld [vmem:[#allocation6 + $0x1e0] sm:$0xff]
    %v756 = vld [vmem:[#allocation6 + $0x1e8] sm:$0xff]
    %v757 = vld [vmem:[#allocation6 + $0x1f0] sm:$0xff]
    %v758 = vld [vmem:[#allocation6 + $0x1f8] sm:$0xff]
    %v759 = vld [vmem:[#allocation6 + $0x200] sm:$0xff]
    %v760 = vld [vmem:[#allocation6 + $0x208] sm:$0xff]
    %v761 = vld [vmem:[#allocation6 + $0x210] sm:$0xff]
    %v762 = vld [vmem:[#allocation6 + $0x218] sm:$0xff]
    %v763 = vld [vmem:[#allocation6 + $0x220] sm:$0xff]
    %v764 = vld [vmem:[#allocation6 + $0x228] sm:$0xff]
    %v765 = vld [vmem:[#allocation6 + $0x230] sm:$0xff]
    %v766 = vld [vmem:[#allocation6 + $0x238] sm:$0xff]
    %v767 = vld [vmem:[#allocation6 + $0x240] sm:$0xff]
    %v768 = vld [vmem:[#allocation6 + $0x248] sm:$0xff]
    %v769 = vld [vmem:[#allocation6 + $0x250] sm:$0xff]
    %v770 = vld [vmem:[#allocation6 + $0x258] sm:$0xff]
    %v771 = vld [vmem:[#allocation6 + $0x260] sm:$0xff]
    %v772 = vld [vmem:[#allocation6 + $0x268] sm:$0xff]
    %v773 = vld [vmem:[#allocation6 + $0x270] sm:$0xff]
    %v774 = vld [vmem:[#allocation6 + $0x278] sm:$0xff]
    %v775 = vld [vmem:[#allocation6 + $0x280] sm:$0xff]
    %v776 = vld [vmem:[#allocation6 + $0x288] sm:$0xff]
    %v777 = vld [vmem:[#allocation6 + $0x290] sm:$0xff]
    %v778 = vld [vmem:[#allocation6 + $0x298] sm:$0xff]
    %v779 = vld [vmem:[#allocation6 + $0x2a0] sm:$0xff]
    %v780 = vld [vmem:[#allocation6 + $0x2a8] sm:$0xff]
    %v781 = vld [vmem:[#allocation6 + $0x2b0] sm:$0xff]
    %v782 = vld [vmem:[#allocation6 + $0x2b8] sm:$0xff]
    %v783 = vld [vmem:[#allocation6 + $0x2c0] sm:$0xff]
    %v784 = vld [vmem:[#allocation6 + $0x2c8] sm:$0xff]
    %v785 = vld [vmem:[#allocation6 + $0x2d0] sm:$0xff]
    %v786 = vld [vmem:[#allocation6 + $0x2d8] sm:$0xff]
    %v787 = vld [vmem:[#allocation6 + $0x2e0] sm:$0xff]
    %v788 = vld [vmem:[#allocation6 + $0x2e8] sm:$0xff]
    %v789 = vld [vmem:[#allocation6 + $0x2f0] sm:$0xff]
    %v790 = vld [vmem:[#allocation6 + $0x2f8] sm:$0xff]
    %v791 = vld [vmem:[#allocation6 + $0x300] sm:$0xff]
    %v792 = vld [vmem:[#allocation6 + $0x308] sm:$0xff]
    %v793 = vld [vmem:[#allocation6 + $0x310] sm:$0xff]
    %v794 = vld [vmem:[#allocation6 + $0x318] sm:$0xff]
    %v795 = vld [vmem:[#allocation6 + $0x320] sm:$0xff]
    %v796 = vld [vmem:[#allocation6 + $0x328] sm:$0xff]
    %v797 = vld [vmem:[#allocation6 + $0x330] sm:$0xff]
    %v798 = vld [vmem:[#allocation6 + $0x338] sm:$0xff]
    %v799 = vld [vmem:[#allocation6 + $0x340] sm:$0xff]
    %v800 = vld [vmem:[#allocation6 + $0x348] sm:$0xff]
    %v801 = vld [vmem:[#allocation6 + $0x350] sm:$0xff]
    %v802 = vld [vmem:[#allocation6 + $0x358] sm:$0xff]
    %v803 = vld [vmem:[#allocation6 + $0x360] sm:$0xff]
    %v804 = vld [vmem:[#allocation6 + $0x368] sm:$0xff]
    %v805 = vld [vmem:[#allocation6 + $0x370] sm:$0xff]
    %v806 = vld [vmem:[#allocation6 + $0x378] sm:$0xff]
    %v807 = vld [vmem:[#allocation6 + $0x380] sm:$0xff]
    %v808 = vld [vmem:[#allocation6 + $0x388] sm:$0xff]
    %v809 = vld [vmem:[#allocation6 + $0x390] sm:$0xff]
    %v810 = vld [vmem:[#allocation6 + $0x398] sm:$0xff]
    %v811 = vld [vmem:[#allocation6 + $0x3a0] sm:$0xff]
    %v812 = vld [vmem:[#allocation6 + $0x3a8] sm:$0xff]
    %v813 = vld [vmem:[#allocation6 + $0x3b0] sm:$0xff]
    %v814 = vld [vmem:[#allocation6 + $0x3b8] sm:$0xff]
    %v815 = vld [vmem:[#allocation6 + $0x3c0] sm:$0xff]
    %v816 = vld [vmem:[#allocation6 + $0x3c8] sm:$0xff]
    %v817 = vld [vmem:[#allocation6 + $0x3d0] sm:$0xff]
    %v818 = vld [vmem:[#allocation6 + $0x3d8] sm:$0xff]
    %v819 = vld [vmem:[#allocation6 + $0x3e0] sm:$0xff]
    %v820 = vld [vmem:[#allocation6 + $0x3e8] sm:$0xff]
    %v821 = vld [vmem:[#allocation6 + $0x3f0] sm:$0xff]
    %v822 = vld [vmem:[#allocation6 + $0x3f8] sm:$0xff]
    %v823 = vld [vmem:[#allocation6 + $0x400] sm:$0xff]
    %v824 = vld [vmem:[#allocation6 + $0x408] sm:$0xff]
    %v825 = vld [vmem:[#allocation6 + $0x410] sm:$0xff]
    %v826 = vld [vmem:[#allocation6 + $0x418] sm:$0xff]
    %v827 = vld [vmem:[#allocation6 + $0x420] sm:$0xff]
    %v828 = vld [vmem:[#allocation6 + $0x428] sm:$0xff]
    %v829 = vld [vmem:[#allocation6 + $0x430] sm:$0xff]
    %v830 = vld [vmem:[#allocation6 + $0x438] sm:$0xff]
    %v831 = vld [vmem:[#allocation6 + $0x440] sm:$0xff]
    %v832 = vld [vmem:[#allocation6 + $0x448] sm:$0xff]
    %v833 = vld [vmem:[#allocation6 + $0x450] sm:$0xff]
    %v834 = vld [vmem:[#allocation6 + $0x458] sm:$0xff]
    %v835 = vld [vmem:[#allocation6 + $0x460] sm:$0xff]
    %v836 = vld [vmem:[#allocation6 + $0x468] sm:$0xff]
    %v837 = vld [vmem:[#allocation6 + $0x470] sm:$0xff]
    %v838 = vld [vmem:[#allocation6 + $0x478] sm:$0xff]
    %v839 = vld [vmem:[#allocation6 + $0x480] sm:$0xff]
    %v840 = vld [vmem:[#allocation6 + $0x488] sm:$0xff]
    %v841 = vld [vmem:[#allocation6 + $0x490] sm:$0xff]
    %v842 = vld [vmem:[#allocation6 + $0x498] sm:$0xff]
    %v843 = vld [vmem:[#allocation6 + $0x4a0] sm:$0xff]
    %v844 = vld [vmem:[#allocation6 + $0x4a8] sm:$0xff]
    %v845 = vld [vmem:[#allocation6 + $0x4b0] sm:$0xff]
    %v846 = vld [vmem:[#allocation6 + $0x4b8] sm:$0xff]
    %v847 = vld [vmem:[#allocation6 + $0x4c0] sm:$0xff]
    %v848 = vld [vmem:[#allocation6 + $0x4c8] sm:$0xff]
    %v849 = vld [vmem:[#allocation6 + $0x4d0] sm:$0xff]
    %v850 = vld [vmem:[#allocation6 + $0x4d8] sm:$0xff]
    %v851 = vld [vmem:[#allocation6 + $0x4e0] sm:$0xff]
    %v852 = vld [vmem:[#allocation6 + $0x4e8] sm:$0xff]
    %v853 = vld [vmem:[#allocation6 + $0x4f0] sm:$0xff]
    %v854 = vld [vmem:[#allocation6 + $0x4f8] sm:$0xff]
    %v855 = vld [vmem:[#allocation6 + $0x500] sm:$0xff]
    %v856 = vld [vmem:[#allocation6 + $0x508] sm:$0xff]
    %v857 = vld [vmem:[#allocation6 + $0x510] sm:$0xff]
    %v858 = vld [vmem:[#allocation6 + $0x518] sm:$0xff]
    %v859 = vld [vmem:[#allocation6 + $0x520] sm:$0xff]
    %v860 = vld [vmem:[#allocation6 + $0x528] sm:$0xff]
    %v861 = vld [vmem:[#allocation6 + $0x530] sm:$0xff]
    %v862 = vld [vmem:[#allocation6 + $0x538] sm:$0xff]
    %v863 = vld [vmem:[#allocation6 + $0x540] sm:$0xff]
    %v864 = vld [vmem:[#allocation6 + $0x548] sm:$0xff]
    %v865 = vld [vmem:[#allocation6 + $0x550] sm:$0xff]
    %v866 = vld [vmem:[#allocation6 + $0x558] sm:$0xff]
    %v867 = vld [vmem:[#allocation6 + $0x560] sm:$0xff]
    %v868 = vld [vmem:[#allocation6 + $0x568] sm:$0xff]
    %v869 = vld [vmem:[#allocation6 + $0x570] sm:$0xff]
    %v870 = vld [vmem:[#allocation6 + $0x578] sm:$0xff]
    %v871 = vld [vmem:[#allocation6 + $0x580] sm:$0xff]
    %v872 = vld [vmem:[#allocation6 + $0x588] sm:$0xff]
    %v873 = vld [vmem:[#allocation6 + $0x590] sm:$0xff]
    %v874 = vld [vmem:[#allocation6 + $0x598] sm:$0xff]
    %v875 = vld [vmem:[#allocation6 + $0x5a0] sm:$0xff]
    %v876 = vld [vmem:[#allocation6 + $0x5a8] sm:$0xff]
    %v877 = vld [vmem:[#allocation6 + $0x5b0] sm:$0xff]
    %v878 = vld [vmem:[#allocation6 + $0x5b8] sm:$0xff]
    %v879 = vld [vmem:[#allocation6 + $0x5c0] sm:$0xff]
    %v880 = vld [vmem:[#allocation6 + $0x5c8] sm:$0xff]
    %v881 = vld [vmem:[#allocation6 + $0x5d0] sm:$0xff]
    %v882 = vld [vmem:[#allocation6 + $0x5d8] sm:$0xff]
    %v883 = vld [vmem:[#allocation6 + $0x5e0] sm:$0xff]
    %v884 = vld [vmem:[#allocation6 + $0x5e8] sm:$0xff]
    %v885 = vld [vmem:[#allocation6 + $0x5f0] sm:$0xff]
    %v886 = vld [vmem:[#allocation6 + $0x5f8] sm:$0xff]
    %v887 = vld [vmem:[#allocation6 + $0x600] sm:$0xff]
    %v888 = vld [vmem:[#allocation6 + $0x608] sm:$0xff]
    %v889 = vld [vmem:[#allocation6 + $0x610] sm:$0xff]
    %v890 = vld [vmem:[#allocation6 + $0x618] sm:$0xff]
    %v891 = vld [vmem:[#allocation6 + $0x620] sm:$0xff]
    %v892 = vld [vmem:[#allocation6 + $0x628] sm:$0xff]
    %v893 = vld [vmem:[#allocation6 + $0x630] sm:$0xff]
    %v894 = vld [vmem:[#allocation6 + $0x638] sm:$0xff]
    %v895 = vld [vmem:[#allocation6 + $0x640] sm:$0xff]
    %v896 = vld [vmem:[#allocation6 + $0x648] sm:$0xff]
    %v897 = vld [vmem:[#allocation6 + $0x650] sm:$0xff]
    %v898 = vld [vmem:[#allocation6 + $0x658] sm:$0xff]
    %v899 = vld [vmem:[#allocation6 + $0x660] sm:$0xff]
    %v900 = vld [vmem:[#allocation6 + $0x668] sm:$0xff]
    %v901 = vld [vmem:[#allocation6 + $0x670] sm:$0xff]
    %v902 = vld [vmem:[#allocation6 + $0x678] sm:$0xff]
    %v903 = vld [vmem:[#allocation6 + $0x680] sm:$0xff]
    %v904 = vld [vmem:[#allocation6 + $0x688] sm:$0xff]
    %v905 = vld [vmem:[#allocation6 + $0x690] sm:$0xff]
    %v906 = vld [vmem:[#allocation6 + $0x698] sm:$0xff]
    %v907 = vld [vmem:[#allocation6 + $0x6a0] sm:$0xff]
    %v908 = vld [vmem:[#allocation6 + $0x6a8] sm:$0xff]
    %v909 = vld [vmem:[#allocation6 + $0x6b0] sm:$0xff]
    %v910 = vld [vmem:[#allocation6 + $0x6b8] sm:$0xff]
    %v911 = vld [vmem:[#allocation6 + $0x6c0] sm:$0xff]
    %v912 = vld [vmem:[#allocation6 + $0x6c8] sm:$0xff]
    %v913 = vld [vmem:[#allocation6 + $0x6d0] sm:$0xff]
    %v914 = vld [vmem:[#allocation6 + $0x6d8] sm:$0xff]
    %v915 = vld [vmem:[#allocation6 + $0x6e0] sm:$0xff]
    %v916 = vld [vmem:[#allocation6 + $0x6e8] sm:$0xff]
    %v917 = vld [vmem:[#allocation6 + $0x6f0] sm:$0xff]
    %v918 = vld [vmem:[#allocation6 + $0x6f8] sm:$0xff]
    %v919 = vld [vmem:[#allocation6 + $0x700] sm:$0xff]
    %v920 = vld [vmem:[#allocation6 + $0x708] sm:$0xff]
    %v921 = vld [vmem:[#allocation6 + $0x710] sm:$0xff]
    %v922 = vld [vmem:[#allocation6 + $0x718] sm:$0xff]
    %v923 = vld [vmem:[#allocation6 + $0x720] sm:$0xff]
    %v924 = vld [vmem:[#allocation6 + $0x728] sm:$0xff]
    %v925 = vld [vmem:[#allocation6 + $0x730] sm:$0xff]
    %v926 = vld [vmem:[#allocation6 + $0x738] sm:$0xff]
    %v927 = vld [vmem:[#allocation6 + $0x740] sm:$0xff]
    %v928 = vld [vmem:[#allocation6 + $0x748] sm:$0xff]
    %v929 = vld [vmem:[#allocation6 + $0x750] sm:$0xff]
    %v930 = vld [vmem:[#allocation6 + $0x758] sm:$0xff]
    %v931 = vld [vmem:[#allocation6 + $0x760] sm:$0xff]
    %v932 = vld [vmem:[#allocation6 + $0x768] sm:$0xff]
    %v933 = vld [vmem:[#allocation6 + $0x770] sm:$0xff]
    %v934 = vld [vmem:[#allocation6 + $0x778] sm:$0xff]
    %v935 = vld [vmem:[#allocation6 + $0x780] sm:$0xff]
    %v936 = vld [vmem:[#allocation6 + $0x788] sm:$0xff]
    %v937 = vld [vmem:[#allocation6 + $0x790] sm:$0xff]
    %v938 = vld [vmem:[#allocation6 + $0x798] sm:$0xff]
    %v939 = vld [vmem:[#allocation6 + $0x7a0] sm:$0xff]
    %v940 = vld [vmem:[#allocation6 + $0x7a8] sm:$0xff]
    %v941 = vld [vmem:[#allocation6 + $0x7b0] sm:$0xff]
    %v942 = vld [vmem:[#allocation6 + $0x7b8] sm:$0xff]
    %v943 = vld [vmem:[#allocation6 + $0x7c0] sm:$0xff]
    %v944 = vld [vmem:[#allocation6 + $0x7c8] sm:$0xff]
    %v945 = vld [vmem:[#allocation6 + $0x7d0] sm:$0xff]
    %v946 = vld [vmem:[#allocation6 + $0x7d8] sm:$0xff]
    %v947 = vld [vmem:[#allocation6 + $0x7e0] sm:$0xff]
    %v948 = vld [vmem:[#allocation6 + $0x7e8] sm:$0xff]
    %v949 = vld [vmem:[#allocation6 + $0x7f0] sm:$0xff]
    %v950 = vld [vmem:[#allocation6 + $0x7f8] sm:$0xff]
    %v952 = vlaneseq
    %v953 = vshrl.u32 %v952, 7
    %v954 = vsub.s32 0, %v953
    %v955 = vrot.slane %v70, %v954
    %v956 = vlaneseq
    %v957 = vshrl.u32 %v956, 7
    %v958 = vsub.s32 1, %v957
    %v959 = vrot.slane %v70, %v958
    %v960 = vlaneseq
    %v961 = vshrl.u32 %v960, 7
    %v962 = vsub.s32 2, %v961
    %v963 = vrot.slane %v70, %v962
    %v964 = vlaneseq
    %v965 = vshrl.u32 %v964, 7
    %v966 = vsub.s32 3, %v965
    %v967 = vrot.slane %v70, %v966
    %v1228 = vunpack.c.l.b16 %v695
    %v1229 = vunpack.c.h.b16 %v695
    %v1230 = vunpack.c.l.b16 %v696
    %v1231 = vunpack.c.h.b16 %v696
    %v1232 = vunpack.c.l.b16 %v697
    %v1233 = vunpack.c.h.b16 %v697
    %v1234 = vunpack.c.l.b16 %v698
    %v1235 = vunpack.c.h.b16 %v698
    %v1236 = vunpack.c.l.b16 %v699
    %v1237 = vunpack.c.h.b16 %v699
    %v1238 = vunpack.c.l.b16 %v700
    %v1239 = vunpack.c.h.b16 %v700
    %v1240 = vunpack.c.l.b16 %v701
    %v1241 = vunpack.c.h.b16 %v701
    %v1242 = vunpack.c.l.b16 %v702
    %v1243 = vunpack.c.h.b16 %v702
    %v1244 = vunpack.c.l.b16 %v703
    %v1245 = vunpack.c.h.b16 %v703
    %v1246 = vunpack.c.l.b16 %v704
    %v1247 = vunpack.c.h.b16 %v704
    %v1248 = vunpack.c.l.b16 %v705
    %v1249 = vunpack.c.h.b16 %v705
    %v1250 = vunpack.c.l.b16 %v706
    %v1251 = vunpack.c.h.b16 %v706
    %v1252 = vunpack.c.l.b16 %v707
    %v1253 = vunpack.c.h.b16 %v707
    %v1254 = vunpack.c.l.b16 %v708
    %v1255 = vunpack.c.h.b16 %v708
    %v1256 = vunpack.c.l.b16 %v709
    %v1257 = vunpack.c.h.b16 %v709
    %v1258 = vunpack.c.l.b16 %v710
    %v1259 = vunpack.c.h.b16 %v710
    %v1260 = vunpack.c.l.b16 %v711
    %v1261 = vunpack.c.h.b16 %v711
    %v1262 = vunpack.c.l.b16 %v712
    %v1263 = vunpack.c.h.b16 %v712
    %v1264 = vunpack.c.l.b16 %v713
    %v1265 = vunpack.c.h.b16 %v713
    %v1266 = vunpack.c.l.b16 %v714
    %v1267 = vunpack.c.h.b16 %v714
    %v1268 = vunpack.c.l.b16 %v715
    %v1269 = vunpack.c.h.b16 %v715
    %v1270 = vunpack.c.l.b16 %v716
    %v1271 = vunpack.c.h.b16 %v716
    %v1272 = vunpack.c.l.b16 %v717
    %v1273 = vunpack.c.h.b16 %v717
    %v1274 = vunpack.c.l.b16 %v718
    %v1275 = vunpack.c.h.b16 %v718
    %v1276 = vunpack.c.l.b16 %v719
    %v1277 = vunpack.c.h.b16 %v719
    %v1278 = vunpack.c.l.b16 %v720
    %v1279 = vunpack.c.h.b16 %v720
    %v1280 = vunpack.c.l.b16 %v721
    %v1281 = vunpack.c.h.b16 %v721
    %v1282 = vunpack.c.l.b16 %v722
    %v1283 = vunpack.c.h.b16 %v722
    %v1284 = vunpack.c.l.b16 %v723
    %v1285 = vunpack.c.h.b16 %v723
    %v1286 = vunpack.c.l.b16 %v724
    %v1287 = vunpack.c.h.b16 %v724
    %v1288 = vunpack.c.l.b16 %v725
    %v1289 = vunpack.c.h.b16 %v725
    %v1290 = vunpack.c.l.b16 %v726
    %v1291 = vunpack.c.h.b16 %v726
    %v1292 = vunpack.c.l.b16 %v727
    %v1293 = vunpack.c.h.b16 %v727
    %v1294 = vunpack.c.l.b16 %v728
    %v1295 = vunpack.c.h.b16 %v728
    %v1296 = vunpack.c.l.b16 %v729
    %v1297 = vunpack.c.h.b16 %v729
    %v1298 = vunpack.c.l.b16 %v730
    %v1299 = vunpack.c.h.b16 %v730
    %v1300 = vunpack.c.l.b16 %v731
    %v1301 = vunpack.c.h.b16 %v731
    %v1302 = vunpack.c.l.b16 %v732
    %v1303 = vunpack.c.h.b16 %v732
    %v1304 = vunpack.c.l.b16 %v733
    %v1305 = vunpack.c.h.b16 %v733
    %v1306 = vunpack.c.l.b16 %v734
    %v1307 = vunpack.c.h.b16 %v734
    %v1308 = vunpack.c.l.b16 %v735
    %v1309 = vunpack.c.h.b16 %v735
    %v1310 = vunpack.c.l.b16 %v736
    %v1311 = vunpack.c.h.b16 %v736
    %v1312 = vunpack.c.l.b16 %v737
    %v1313 = vunpack.c.h.b16 %v737
    %v1314 = vunpack.c.l.b16 %v738
    %v1315 = vunpack.c.h.b16 %v738
    %v1316 = vunpack.c.l.b16 %v739
    %v1317 = vunpack.c.h.b16 %v739
    %v1318 = vunpack.c.l.b16 %v740
    %v1319 = vunpack.c.h.b16 %v740
    %v1320 = vunpack.c.l.b16 %v741
    %v1321 = vunpack.c.h.b16 %v741
    %v1322 = vunpack.c.l.b16 %v742
    %v1323 = vunpack.c.h.b16 %v742
    %v1324 = vunpack.c.l.b16 %v743
    %v1325 = vunpack.c.h.b16 %v743
    %v1326 = vunpack.c.l.b16 %v744
    %v1327 = vunpack.c.h.b16 %v744
    %v1328 = vunpack.c.l.b16 %v745
    %v1329 = vunpack.c.h.b16 %v745
    %v1330 = vunpack.c.l.b16 %v746
    %v1331 = vunpack.c.h.b16 %v746
    %v1332 = vunpack.c.l.b16 %v747
    %v1333 = vunpack.c.h.b16 %v747
    %v1334 = vunpack.c.l.b16 %v748
    %v1335 = vunpack.c.h.b16 %v748
    %v1336 = vunpack.c.l.b16 %v749
    %v1337 = vunpack.c.h.b16 %v749
    %v1338 = vunpack.c.l.b16 %v750
    %v1339 = vunpack.c.h.b16 %v750
    %v1340 = vunpack.c.l.b16 %v751
    %v1341 = vunpack.c.h.b16 %v751
    %v1342 = vunpack.c.l.b16 %v752
    %v1343 = vunpack.c.h.b16 %v752
    %v1344 = vunpack.c.l.b16 %v753
    %v1345 = vunpack.c.h.b16 %v753
    %v1346 = vunpack.c.l.b16 %v754
    %v1347 = vunpack.c.h.b16 %v754
    %v1348 = vunpack.c.l.b16 %v755
    %v1349 = vunpack.c.h.b16 %v755
    %v1350 = vunpack.c.l.b16 %v756
    %v1351 = vunpack.c.h.b16 %v756
    %v1352 = vunpack.c.l.b16 %v757
    %v1353 = vunpack.c.h.b16 %v757
    %v1354 = vunpack.c.l.b16 %v758
    %v1355 = vunpack.c.h.b16 %v758
    %v1356 = vunpack.c.l.b16 %v759
    %v1357 = vunpack.c.h.b16 %v759
    %v1358 = vunpack.c.l.b16 %v760
    %v1359 = vunpack.c.h.b16 %v760
    %v1360 = vunpack.c.l.b16 %v761
    %v1361 = vunpack.c.h.b16 %v761
    %v1362 = vunpack.c.l.b16 %v762
    %v1363 = vunpack.c.h.b16 %v762
    %v1364 = vunpack.c.l.b16 %v763
    %v1365 = vunpack.c.h.b16 %v763
    %v1366 = vunpack.c.l.b16 %v764
    %v1367 = vunpack.c.h.b16 %v764
    %v1368 = vunpack.c.l.b16 %v765
    %v1369 = vunpack.c.h.b16 %v765
    %v1370 = vunpack.c.l.b16 %v766
    %v1371 = vunpack.c.h.b16 %v766
    %v1372 = vunpack.c.l.b16 %v767
    %v1373 = vunpack.c.h.b16 %v767
    %v1374 = vunpack.c.l.b16 %v768
    %v1375 = vunpack.c.h.b16 %v768
    %v1376 = vunpack.c.l.b16 %v769
    %v1377 = vunpack.c.h.b16 %v769
    %v1378 = vunpack.c.l.b16 %v770
    %v1379 = vunpack.c.h.b16 %v770
    %v1380 = vunpack.c.l.b16 %v771
    %v1381 = vunpack.c.h.b16 %v771
    %v1382 = vunpack.c.l.b16 %v772
    %v1383 = vunpack.c.h.b16 %v772
    %v1384 = vunpack.c.l.b16 %v773
    %v1385 = vunpack.c.h.b16 %v773
    %v1386 = vunpack.c.l.b16 %v774
    %v1387 = vunpack.c.h.b16 %v774
    %v1388 = vunpack.c.l.b16 %v775
    %v1389 = vunpack.c.h.b16 %v775
    %v1390 = vunpack.c.l.b16 %v776
    %v1391 = vunpack.c.h.b16 %v776
    %v1392 = vunpack.c.l.b16 %v777
    %v1393 = vunpack.c.h.b16 %v777
    %v1394 = vunpack.c.l.b16 %v778
    %v1395 = vunpack.c.h.b16 %v778
    %v1396 = vunpack.c.l.b16 %v779
    %v1397 = vunpack.c.h.b16 %v779
    %v1398 = vunpack.c.l.b16 %v780
    %v1399 = vunpack.c.h.b16 %v780
    %v1400 = vunpack.c.l.b16 %v781
    %v1401 = vunpack.c.h.b16 %v781
    %v1402 = vunpack.c.l.b16 %v782
    %v1403 = vunpack.c.h.b16 %v782
    %v1404 = vunpack.c.l.b16 %v783
    %v1405 = vunpack.c.h.b16 %v783
    %v1406 = vunpack.c.l.b16 %v784
    %v1407 = vunpack.c.h.b16 %v784
    %v1408 = vunpack.c.l.b16 %v785
    %v1409 = vunpack.c.h.b16 %v785
    %v1410 = vunpack.c.l.b16 %v786
    %v1411 = vunpack.c.h.b16 %v786
    %v1412 = vunpack.c.l.b16 %v787
    %v1413 = vunpack.c.h.b16 %v787
    %v1414 = vunpack.c.l.b16 %v788
    %v1415 = vunpack.c.h.b16 %v788
    %v1416 = vunpack.c.l.b16 %v789
    %v1417 = vunpack.c.h.b16 %v789
    %v1418 = vunpack.c.l.b16 %v790
    %v1419 = vunpack.c.h.b16 %v790
    %v1420 = vunpack.c.l.b16 %v791
    %v1421 = vunpack.c.h.b16 %v791
    %v1422 = vunpack.c.l.b16 %v792
    %v1423 = vunpack.c.h.b16 %v792
    %v1424 = vunpack.c.l.b16 %v793
    %v1425 = vunpack.c.h.b16 %v793
    %v1426 = vunpack.c.l.b16 %v794
    %v1427 = vunpack.c.h.b16 %v794
    %v1428 = vunpack.c.l.b16 %v795
    %v1429 = vunpack.c.h.b16 %v795
    %v1430 = vunpack.c.l.b16 %v796
    %v1431 = vunpack.c.h.b16 %v796
    %v1432 = vunpack.c.l.b16 %v797
    %v1433 = vunpack.c.h.b16 %v797
    %v1434 = vunpack.c.l.b16 %v798
    %v1435 = vunpack.c.h.b16 %v798
    %v1436 = vunpack.c.l.b16 %v799
    %v1437 = vunpack.c.h.b16 %v799
    %v1438 = vunpack.c.l.b16 %v800
    %v1439 = vunpack.c.h.b16 %v800
    %v1440 = vunpack.c.l.b16 %v801
    %v1441 = vunpack.c.h.b16 %v801
    %v1442 = vunpack.c.l.b16 %v802
    %v1443 = vunpack.c.h.b16 %v802
    %v1444 = vunpack.c.l.b16 %v803
    %v1445 = vunpack.c.h.b16 %v803
    %v1446 = vunpack.c.l.b16 %v804
    %v1447 = vunpack.c.h.b16 %v804
    %v1448 = vunpack.c.l.b16 %v805
    %v1449 = vunpack.c.h.b16 %v805
    %v1450 = vunpack.c.l.b16 %v806
    %v1451 = vunpack.c.h.b16 %v806
    %v1452 = vunpack.c.l.b16 %v807
    %v1453 = vunpack.c.h.b16 %v807
    %v1454 = vunpack.c.l.b16 %v808
    %v1455 = vunpack.c.h.b16 %v808
    %v1456 = vunpack.c.l.b16 %v809
    %v1457 = vunpack.c.h.b16 %v809
    %v1458 = vunpack.c.l.b16 %v810
    %v1459 = vunpack.c.h.b16 %v810
    %v1460 = vunpack.c.l.b16 %v811
    %v1461 = vunpack.c.h.b16 %v811
    %v1462 = vunpack.c.l.b16 %v812
    %v1463 = vunpack.c.h.b16 %v812
    %v1464 = vunpack.c.l.b16 %v813
    %v1465 = vunpack.c.h.b16 %v813
    %v1466 = vunpack.c.l.b16 %v814
    %v1467 = vunpack.c.h.b16 %v814
    %v1468 = vunpack.c.l.b16 %v815
    %v1469 = vunpack.c.h.b16 %v815
    %v1470 = vunpack.c.l.b16 %v816
    %v1471 = vunpack.c.h.b16 %v816
    %v1472 = vunpack.c.l.b16 %v817
    %v1473 = vunpack.c.h.b16 %v817
    %v1474 = vunpack.c.l.b16 %v818
    %v1475 = vunpack.c.h.b16 %v818
    %v1476 = vunpack.c.l.b16 %v819
    %v1477 = vunpack.c.h.b16 %v819
    %v1478 = vunpack.c.l.b16 %v820
    %v1479 = vunpack.c.h.b16 %v820
    %v1480 = vunpack.c.l.b16 %v821
    %v1481 = vunpack.c.h.b16 %v821
    %v1482 = vunpack.c.l.b16 %v822
    %v1483 = vunpack.c.h.b16 %v822
    %v1484 = vunpack.c.l.b16 %v823
    %v1485 = vunpack.c.h.b16 %v823
    %v1486 = vunpack.c.l.b16 %v824
    %v1487 = vunpack.c.h.b16 %v824
    %v1488 = vunpack.c.l.b16 %v825
    %v1489 = vunpack.c.h.b16 %v825
    %v1490 = vunpack.c.l.b16 %v826
    %v1491 = vunpack.c.h.b16 %v826
    %v1492 = vunpack.c.l.b16 %v827
    %v1493 = vunpack.c.h.b16 %v827
    %v1494 = vunpack.c.l.b16 %v828
    %v1495 = vunpack.c.h.b16 %v828
    %v1496 = vunpack.c.l.b16 %v829
    %v1497 = vunpack.c.h.b16 %v829
    %v1498 = vunpack.c.l.b16 %v830
    %v1499 = vunpack.c.h.b16 %v830
    %v1500 = vunpack.c.l.b16 %v831
    %v1501 = vunpack.c.h.b16 %v831
    %v1502 = vunpack.c.l.b16 %v832
    %v1503 = vunpack.c.h.b16 %v832
    %v1504 = vunpack.c.l.b16 %v833
    %v1505 = vunpack.c.h.b16 %v833
    %v1506 = vunpack.c.l.b16 %v834
    %v1507 = vunpack.c.h.b16 %v834
    %v1508 = vunpack.c.l.b16 %v835
    %v1509 = vunpack.c.h.b16 %v835
    %v1510 = vunpack.c.l.b16 %v836
    %v1511 = vunpack.c.h.b16 %v836
    %v1512 = vunpack.c.l.b16 %v837
    %v1513 = vunpack.c.h.b16 %v837
    %v1514 = vunpack.c.l.b16 %v838
    %v1515 = vunpack.c.h.b16 %v838
    %v1516 = vunpack.c.l.b16 %v839
    %v1517 = vunpack.c.h.b16 %v839
    %v1518 = vunpack.c.l.b16 %v840
    %v1519 = vunpack.c.h.b16 %v840
    %v1520 = vunpack.c.l.b16 %v841
    %v1521 = vunpack.c.h.b16 %v841
    %v1522 = vunpack.c.l.b16 %v842
    %v1523 = vunpack.c.h.b16 %v842
    %v1524 = vunpack.c.l.b16 %v843
    %v1525 = vunpack.c.h.b16 %v843
    %v1526 = vunpack.c.l.b16 %v844
    %v1527 = vunpack.c.h.b16 %v844
    %v1528 = vunpack.c.l.b16 %v845
    %v1529 = vunpack.c.h.b16 %v845
    %v1530 = vunpack.c.l.b16 %v846
    %v1531 = vunpack.c.h.b16 %v846
    %v1532 = vunpack.c.l.b16 %v847
    %v1533 = vunpack.c.h.b16 %v847
    %v1534 = vunpack.c.l.b16 %v848
    %v1535 = vunpack.c.h.b16 %v848
    %v1536 = vunpack.c.l.b16 %v849
    %v1537 = vunpack.c.h.b16 %v849
    %v1538 = vunpack.c.l.b16 %v850
    %v1539 = vunpack.c.h.b16 %v850
    %v1540 = vunpack.c.l.b16 %v851
    %v1541 = vunpack.c.h.b16 %v851
    %v1542 = vunpack.c.l.b16 %v852
    %v1543 = vunpack.c.h.b16 %v852
    %v1544 = vunpack.c.l.b16 %v853
    %v1545 = vunpack.c.h.b16 %v853
    %v1546 = vunpack.c.l.b16 %v854
    %v1547 = vunpack.c.h.b16 %v854
    %v1548 = vunpack.c.l.b16 %v855
    %v1549 = vunpack.c.h.b16 %v855
    %v1550 = vunpack.c.l.b16 %v856
    %v1551 = vunpack.c.h.b16 %v856
    %v1552 = vunpack.c.l.b16 %v857
    %v1553 = vunpack.c.h.b16 %v857
    %v1554 = vunpack.c.l.b16 %v858
    %v1555 = vunpack.c.h.b16 %v858
    %v1556 = vunpack.c.l.b16 %v859
    %v1557 = vunpack.c.h.b16 %v859
    %v1558 = vunpack.c.l.b16 %v860
    %v1559 = vunpack.c.h.b16 %v860
    %v1560 = vunpack.c.l.b16 %v861
    %v1561 = vunpack.c.h.b16 %v861
    %v1562 = vunpack.c.l.b16 %v862
    %v1563 = vunpack.c.h.b16 %v862
    %v1564 = vunpack.c.l.b16 %v863
    %v1565 = vunpack.c.h.b16 %v863
    %v1566 = vunpack.c.l.b16 %v864
    %v1567 = vunpack.c.h.b16 %v864
    %v1568 = vunpack.c.l.b16 %v865
    %v1569 = vunpack.c.h.b16 %v865
    %v1570 = vunpack.c.l.b16 %v866
    %v1571 = vunpack.c.h.b16 %v866
    %v1572 = vunpack.c.l.b16 %v867
    %v1573 = vunpack.c.h.b16 %v867
    %v1574 = vunpack.c.l.b16 %v868
    %v1575 = vunpack.c.h.b16 %v868
    %v1576 = vunpack.c.l.b16 %v869
    %v1577 = vunpack.c.h.b16 %v869
    %v1578 = vunpack.c.l.b16 %v870
    %v1579 = vunpack.c.h.b16 %v870
    %v1580 = vunpack.c.l.b16 %v871
    %v1581 = vunpack.c.h.b16 %v871
    %v1582 = vunpack.c.l.b16 %v872
    %v1583 = vunpack.c.h.b16 %v872
    %v1584 = vunpack.c.l.b16 %v873
    %v1585 = vunpack.c.h.b16 %v873
    %v1586 = vunpack.c.l.b16 %v874
    %v1587 = vunpack.c.h.b16 %v874
    %v1588 = vunpack.c.l.b16 %v875
    %v1589 = vunpack.c.h.b16 %v875
    %v1590 = vunpack.c.l.b16 %v876
    %v1591 = vunpack.c.h.b16 %v876
    %v1592 = vunpack.c.l.b16 %v877
    %v1593 = vunpack.c.h.b16 %v877
    %v1594 = vunpack.c.l.b16 %v878
    %v1595 = vunpack.c.h.b16 %v878
    %v1596 = vunpack.c.l.b16 %v879
    %v1597 = vunpack.c.h.b16 %v879
    %v1598 = vunpack.c.l.b16 %v880
    %v1599 = vunpack.c.h.b16 %v880
    %v1600 = vunpack.c.l.b16 %v881
    %v1601 = vunpack.c.h.b16 %v881
    %v1602 = vunpack.c.l.b16 %v882
    %v1603 = vunpack.c.h.b16 %v882
    %v1604 = vunpack.c.l.b16 %v883
    %v1605 = vunpack.c.h.b16 %v883
    %v1606 = vunpack.c.l.b16 %v884
    %v1607 = vunpack.c.h.b16 %v884
    %v1608 = vunpack.c.l.b16 %v885
    %v1609 = vunpack.c.h.b16 %v885
    %v1610 = vunpack.c.l.b16 %v886
    %v1611 = vunpack.c.h.b16 %v886
    %v1612 = vunpack.c.l.b16 %v887
    %v1613 = vunpack.c.h.b16 %v887
    %v1614 = vunpack.c.l.b16 %v888
    %v1615 = vunpack.c.h.b16 %v888
    %v1616 = vunpack.c.l.b16 %v889
    %v1617 = vunpack.c.h.b16 %v889
    %v1618 = vunpack.c.l.b16 %v890
    %v1619 = vunpack.c.h.b16 %v890
    %v1620 = vunpack.c.l.b16 %v891
    %v1621 = vunpack.c.h.b16 %v891
    %v1622 = vunpack.c.l.b16 %v892
    %v1623 = vunpack.c.h.b16 %v892
    %v1624 = vunpack.c.l.b16 %v893
    %v1625 = vunpack.c.h.b16 %v893
    %v1626 = vunpack.c.l.b16 %v894
    %v1627 = vunpack.c.h.b16 %v894
    %v1628 = vunpack.c.l.b16 %v895
    %v1629 = vunpack.c.h.b16 %v895
    %v1630 = vunpack.c.l.b16 %v896
    %v1631 = vunpack.c.h.b16 %v896
    %v1632 = vunpack.c.l.b16 %v897
    %v1633 = vunpack.c.h.b16 %v897
    %v1634 = vunpack.c.l.b16 %v898
    %v1635 = vunpack.c.h.b16 %v898
    %v1636 = vunpack.c.l.b16 %v899
    %v1637 = vunpack.c.h.b16 %v899
    %v1638 = vunpack.c.l.b16 %v900
    %v1639 = vunpack.c.h.b16 %v900
    %v1640 = vunpack.c.l.b16 %v901
    %v1641 = vunpack.c.h.b16 %v901
    %v1642 = vunpack.c.l.b16 %v902
    %v1643 = vunpack.c.h.b16 %v902
    %v1644 = vunpack.c.l.b16 %v903
    %v1645 = vunpack.c.h.b16 %v903
    %v1646 = vunpack.c.l.b16 %v904
    %v1647 = vunpack.c.h.b16 %v904
    %v1648 = vunpack.c.l.b16 %v905
    %v1649 = vunpack.c.h.b16 %v905
    %v1650 = vunpack.c.l.b16 %v906
    %v1651 = vunpack.c.h.b16 %v906
    %v1652 = vunpack.c.l.b16 %v907
    %v1653 = vunpack.c.h.b16 %v907
    %v1654 = vunpack.c.l.b16 %v908
    %v1655 = vunpack.c.h.b16 %v908
    %v1656 = vunpack.c.l.b16 %v909
    %v1657 = vunpack.c.h.b16 %v909
    %v1658 = vunpack.c.l.b16 %v910
    %v1659 = vunpack.c.h.b16 %v910
    %v1660 = vunpack.c.l.b16 %v911
    %v1661 = vunpack.c.h.b16 %v911
    %v1662 = vunpack.c.l.b16 %v912
    %v1663 = vunpack.c.h.b16 %v912
    %v1664 = vunpack.c.l.b16 %v913
    %v1665 = vunpack.c.h.b16 %v913
    %v1666 = vunpack.c.l.b16 %v914
    %v1667 = vunpack.c.h.b16 %v914
    %v1668 = vunpack.c.l.b16 %v915
    %v1669 = vunpack.c.h.b16 %v915
    %v1670 = vunpack.c.l.b16 %v916
    %v1671 = vunpack.c.h.b16 %v916
    %v1672 = vunpack.c.l.b16 %v917
    %v1673 = vunpack.c.h.b16 %v917
    %v1674 = vunpack.c.l.b16 %v918
    %v1675 = vunpack.c.h.b16 %v918
    %v1676 = vunpack.c.l.b16 %v919
    %v1677 = vunpack.c.h.b16 %v919
    %v1678 = vunpack.c.l.b16 %v920
    %v1679 = vunpack.c.h.b16 %v920
    %v1680 = vunpack.c.l.b16 %v921
    %v1681 = vunpack.c.h.b16 %v921
    %v1682 = vunpack.c.l.b16 %v922
    %v1683 = vunpack.c.h.b16 %v922
    %v1684 = vunpack.c.l.b16 %v923
    %v1685 = vunpack.c.h.b16 %v923
    %v1686 = vunpack.c.l.b16 %v924
    %v1687 = vunpack.c.h.b16 %v924
    %v1688 = vunpack.c.l.b16 %v925
    %v1689 = vunpack.c.h.b16 %v925
    %v1690 = vunpack.c.l.b16 %v926
    %v1691 = vunpack.c.h.b16 %v926
    %v1692 = vunpack.c.l.b16 %v927
    %v1693 = vunpack.c.h.b16 %v927
    %v1694 = vunpack.c.l.b16 %v928
    %v1695 = vunpack.c.h.b16 %v928
    %v1696 = vunpack.c.l.b16 %v929
    %v1697 = vunpack.c.h.b16 %v929
    %v1698 = vunpack.c.l.b16 %v930
    %v1699 = vunpack.c.h.b16 %v930
    %v1700 = vunpack.c.l.b16 %v931
    %v1701 = vunpack.c.h.b16 %v931
    %v1702 = vunpack.c.l.b16 %v932
    %v1703 = vunpack.c.h.b16 %v932
    %v1704 = vunpack.c.l.b16 %v933
    %v1705 = vunpack.c.h.b16 %v933
    %v1706 = vunpack.c.l.b16 %v934
    %v1707 = vunpack.c.h.b16 %v934
    %v1708 = vunpack.c.l.b16 %v935
    %v1709 = vunpack.c.h.b16 %v935
    %v1710 = vunpack.c.l.b16 %v936
    %v1711 = vunpack.c.h.b16 %v936
    %v1712 = vunpack.c.l.b16 %v937
    %v1713 = vunpack.c.h.b16 %v937
    %v1714 = vunpack.c.l.b16 %v938
    %v1715 = vunpack.c.h.b16 %v938
    %v1716 = vunpack.c.l.b16 %v939
    %v1717 = vunpack.c.h.b16 %v939
    %v1718 = vunpack.c.l.b16 %v940
    %v1719 = vunpack.c.h.b16 %v940
    %v1720 = vunpack.c.l.b16 %v941
    %v1721 = vunpack.c.h.b16 %v941
    %v1722 = vunpack.c.l.b16 %v942
    %v1723 = vunpack.c.h.b16 %v942
    %v1724 = vunpack.c.l.b16 %v943
    %v1725 = vunpack.c.h.b16 %v943
    %v1726 = vunpack.c.l.b16 %v944
    %v1727 = vunpack.c.h.b16 %v944
    %v1728 = vunpack.c.l.b16 %v945
    %v1729 = vunpack.c.h.b16 %v945
    %v1730 = vunpack.c.l.b16 %v946
    %v1731 = vunpack.c.h.b16 %v946
    %v1732 = vunpack.c.l.b16 %v947
    %v1733 = vunpack.c.h.b16 %v947
    %v1734 = vunpack.c.l.b16 %v948
    %v1735 = vunpack.c.h.b16 %v948
    %v1736 = vunpack.c.l.b16 %v949
    %v1737 = vunpack.c.h.b16 %v949
    %v1738 = vunpack.c.l.b16 %v950
    %v1739 = vunpack.c.h.b16 %v950
    %v1740 = vpack.c.b16 %v1232, %v1228
    %v1741 = vpack.c.b16 %v1233, %v1229
    %v1742 = vpack.c.b16 %v1234, %v1230
    %v1743 = vpack.c.b16 %v1235, %v1231
    %v1744 = vpack.c.b16 %v1240, %v1236
    %v1745 = vpack.c.b16 %v1241, %v1237
    %v1746 = vpack.c.b16 %v1242, %v1238
    %v1747 = vpack.c.b16 %v1243, %v1239
    %v1748 = vpack.c.b16 %v1248, %v1244
    %v1749 = vpack.c.b16 %v1249, %v1245
    %v1750 = vpack.c.b16 %v1250, %v1246
    %v1751 = vpack.c.b16 %v1251, %v1247
    %v1752 = vpack.c.b16 %v1256, %v1252
    %v1753 = vpack.c.b16 %v1257, %v1253
    %v1754 = vpack.c.b16 %v1258, %v1254
    %v1755 = vpack.c.b16 %v1259, %v1255
    %v1756 = vpack.c.b16 %v1264, %v1260
    %v1757 = vpack.c.b16 %v1265, %v1261
    %v1758 = vpack.c.b16 %v1266, %v1262
    %v1759 = vpack.c.b16 %v1267, %v1263
    %v1760 = vpack.c.b16 %v1272, %v1268
    %v1761 = vpack.c.b16 %v1273, %v1269
    %v1762 = vpack.c.b16 %v1274, %v1270
    %v1763 = vpack.c.b16 %v1275, %v1271
    %v1764 = vpack.c.b16 %v1280, %v1276
    %v1765 = vpack.c.b16 %v1281, %v1277
    %v1766 = vpack.c.b16 %v1282, %v1278
    %v1767 = vpack.c.b16 %v1283, %v1279
    %v1768 = vpack.c.b16 %v1288, %v1284
    %v1769 = vpack.c.b16 %v1289, %v1285
    %v1770 = vpack.c.b16 %v1290, %v1286
    %v1771 = vpack.c.b16 %v1291, %v1287
    %v1772 = vpack.c.b16 %v1296, %v1292
    %v1773 = vpack.c.b16 %v1297, %v1293
    %v1774 = vpack.c.b16 %v1298, %v1294
    %v1775 = vpack.c.b16 %v1299, %v1295
    %v1776 = vpack.c.b16 %v1304, %v1300
    %v1777 = vpack.c.b16 %v1305, %v1301
    %v1778 = vpack.c.b16 %v1306, %v1302
    %v1779 = vpack.c.b16 %v1307, %v1303
    %v1780 = vpack.c.b16 %v1312, %v1308
    %v1781 = vpack.c.b16 %v1313, %v1309
    %v1782 = vpack.c.b16 %v1314, %v1310
    %v1783 = vpack.c.b16 %v1315, %v1311
    %v1784 = vpack.c.b16 %v1320, %v1316
    %v1785 = vpack.c.b16 %v1321, %v1317
    %v1786 = vpack.c.b16 %v1322, %v1318
    %v1787 = vpack.c.b16 %v1323, %v1319
    %v1788 = vpack.c.b16 %v1328, %v1324
    %v1789 = vpack.c.b16 %v1329, %v1325
    %v1790 = vpack.c.b16 %v1330, %v1326
    %v1791 = vpack.c.b16 %v1331, %v1327
    %v1792 = vpack.c.b16 %v1336, %v1332
    %v1793 = vpack.c.b16 %v1337, %v1333
    %v1794 = vpack.c.b16 %v1338, %v1334
    %v1795 = vpack.c.b16 %v1339, %v1335
    %v1796 = vpack.c.b16 %v1344, %v1340
    %v1797 = vpack.c.b16 %v1345, %v1341
    %v1798 = vpack.c.b16 %v1346, %v1342
    %v1799 = vpack.c.b16 %v1347, %v1343
    %v1800 = vpack.c.b16 %v1352, %v1348
    %v1801 = vpack.c.b16 %v1353, %v1349
    %v1802 = vpack.c.b16 %v1354, %v1350
    %v1803 = vpack.c.b16 %v1355, %v1351
    %v1804 = vpack.c.b16 %v1360, %v1356
    %v1805 = vpack.c.b16 %v1361, %v1357
    %v1806 = vpack.c.b16 %v1362, %v1358
    %v1807 = vpack.c.b16 %v1363, %v1359
    %v1808 = vpack.c.b16 %v1368, %v1364
    %v1809 = vpack.c.b16 %v1369, %v1365
    %v1810 = vpack.c.b16 %v1370, %v1366
    %v1811 = vpack.c.b16 %v1371, %v1367
    %v1812 = vpack.c.b16 %v1376, %v1372
    %v1813 = vpack.c.b16 %v1377, %v1373
    %v1814 = vpack.c.b16 %v1378, %v1374
    %v1815 = vpack.c.b16 %v1379, %v1375
    %v1816 = vpack.c.b16 %v1384, %v1380
    %v1817 = vpack.c.b16 %v1385, %v1381
    %v1818 = vpack.c.b16 %v1386, %v1382
    %v1819 = vpack.c.b16 %v1387, %v1383
    %v1820 = vpack.c.b16 %v1392, %v1388
    %v1821 = vpack.c.b16 %v1393, %v1389
    %v1822 = vpack.c.b16 %v1394, %v1390
    %v1823 = vpack.c.b16 %v1395, %v1391
    %v1824 = vpack.c.b16 %v1400, %v1396
    %v1825 = vpack.c.b16 %v1401, %v1397
    %v1826 = vpack.c.b16 %v1402, %v1398
    %v1827 = vpack.c.b16 %v1403, %v1399
    %v1828 = vpack.c.b16 %v1408, %v1404
    %v1829 = vpack.c.b16 %v1409, %v1405
    %v1830 = vpack.c.b16 %v1410, %v1406
    %v1831 = vpack.c.b16 %v1411, %v1407
    %v1832 = vpack.c.b16 %v1416, %v1412
    %v1833 = vpack.c.b16 %v1417, %v1413
    %v1834 = vpack.c.b16 %v1418, %v1414
    %v1835 = vpack.c.b16 %v1419, %v1415
    %v1836 = vpack.c.b16 %v1424, %v1420
    %v1837 = vpack.c.b16 %v1425, %v1421
    %v1838 = vpack.c.b16 %v1426, %v1422
    %v1839 = vpack.c.b16 %v1427, %v1423
    %v1840 = vpack.c.b16 %v1432, %v1428
    %v1841 = vpack.c.b16 %v1433, %v1429
    %v1842 = vpack.c.b16 %v1434, %v1430
    %v1843 = vpack.c.b16 %v1435, %v1431
    %v1844 = vpack.c.b16 %v1440, %v1436
    %v1845 = vpack.c.b16 %v1441, %v1437
    %v1846 = vpack.c.b16 %v1442, %v1438
    %v1847 = vpack.c.b16 %v1443, %v1439
    %v1848 = vpack.c.b16 %v1448, %v1444
    %v1849 = vpack.c.b16 %v1449, %v1445
    %v1850 = vpack.c.b16 %v1450, %v1446
    %v1851 = vpack.c.b16 %v1451, %v1447
    %v1852 = vpack.c.b16 %v1456, %v1452
    %v1853 = vpack.c.b16 %v1457, %v1453
    %v1854 = vpack.c.b16 %v1458, %v1454
    %v1855 = vpack.c.b16 %v1459, %v1455
    %v1856 = vpack.c.b16 %v1464, %v1460
    %v1857 = vpack.c.b16 %v1465, %v1461
    %v1858 = vpack.c.b16 %v1466, %v1462
    %v1859 = vpack.c.b16 %v1467, %v1463
    %v1860 = vpack.c.b16 %v1472, %v1468
    %v1861 = vpack.c.b16 %v1473, %v1469
    %v1862 = vpack.c.b16 %v1474, %v1470
    %v1863 = vpack.c.b16 %v1475, %v1471
    %v1864 = vpack.c.b16 %v1480, %v1476
    %v1865 = vpack.c.b16 %v1481, %v1477
    %v1866 = vpack.c.b16 %v1482, %v1478
    %v1867 = vpack.c.b16 %v1483, %v1479
    %v1868 = vpack.c.b16 %v1488, %v1484
    %v1869 = vpack.c.b16 %v1489, %v1485
    %v1870 = vpack.c.b16 %v1490, %v1486
    %v1871 = vpack.c.b16 %v1491, %v1487
    %v1872 = vpack.c.b16 %v1496, %v1492
    %v1873 = vpack.c.b16 %v1497, %v1493
    %v1874 = vpack.c.b16 %v1498, %v1494
    %v1875 = vpack.c.b16 %v1499, %v1495
    %v1876 = vpack.c.b16 %v1504, %v1500
    %v1877 = vpack.c.b16 %v1505, %v1501
    %v1878 = vpack.c.b16 %v1506, %v1502
    %v1879 = vpack.c.b16 %v1507, %v1503
    %v1880 = vpack.c.b16 %v1512, %v1508
    %v1881 = vpack.c.b16 %v1513, %v1509
    %v1882 = vpack.c.b16 %v1514, %v1510
    %v1883 = vpack.c.b16 %v1515, %v1511
    %v1884 = vpack.c.b16 %v1520, %v1516
    %v1885 = vpack.c.b16 %v1521, %v1517
    %v1886 = vpack.c.b16 %v1522, %v1518
    %v1887 = vpack.c.b16 %v1523, %v1519
    %v1888 = vpack.c.b16 %v1528, %v1524
    %v1889 = vpack.c.b16 %v1529, %v1525
    %v1890 = vpack.c.b16 %v1530, %v1526
    %v1891 = vpack.c.b16 %v1531, %v1527
    %v1892 = vpack.c.b16 %v1536, %v1532
    %v1893 = vpack.c.b16 %v1537, %v1533
    %v1894 = vpack.c.b16 %v1538, %v1534
    %v1895 = vpack.c.b16 %v1539, %v1535
    %v1896 = vpack.c.b16 %v1544, %v1540
    %v1897 = vpack.c.b16 %v1545, %v1541
    %v1898 = vpack.c.b16 %v1546, %v1542
    %v1899 = vpack.c.b16 %v1547, %v1543
    %v1900 = vpack.c.b16 %v1552, %v1548
    %v1901 = vpack.c.b16 %v1553, %v1549
    %v1902 = vpack.c.b16 %v1554, %v1550
    %v1903 = vpack.c.b16 %v1555, %v1551
    %v1904 = vpack.c.b16 %v1560, %v1556
    %v1905 = vpack.c.b16 %v1561, %v1557
    %v1906 = vpack.c.b16 %v1562, %v1558
    %v1907 = vpack.c.b16 %v1563, %v1559
    %v1908 = vpack.c.b16 %v1568, %v1564
    %v1909 = vpack.c.b16 %v1569, %v1565
    %v1910 = vpack.c.b16 %v1570, %v1566
    %v1911 = vpack.c.b16 %v1571, %v1567
    %v1912 = vpack.c.b16 %v1576, %v1572
    %v1913 = vpack.c.b16 %v1577, %v1573
    %v1914 = vpack.c.b16 %v1578, %v1574
    %v1915 = vpack.c.b16 %v1579, %v1575
    %v1916 = vpack.c.b16 %v1584, %v1580
    %v1917 = vpack.c.b16 %v1585, %v1581
    %v1918 = vpack.c.b16 %v1586, %v1582
    %v1919 = vpack.c.b16 %v1587, %v1583
    %v1920 = vpack.c.b16 %v1592, %v1588
    %v1921 = vpack.c.b16 %v1593, %v1589
    %v1922 = vpack.c.b16 %v1594, %v1590
    %v1923 = vpack.c.b16 %v1595, %v1591
    %v1924 = vpack.c.b16 %v1600, %v1596
    %v1925 = vpack.c.b16 %v1601, %v1597
    %v1926 = vpack.c.b16 %v1602, %v1598
    %v1927 = vpack.c.b16 %v1603, %v1599
    %v1928 = vpack.c.b16 %v1608, %v1604
    %v1929 = vpack.c.b16 %v1609, %v1605
    %v1930 = vpack.c.b16 %v1610, %v1606
    %v1931 = vpack.c.b16 %v1611, %v1607
    %v1932 = vpack.c.b16 %v1616, %v1612
    %v1933 = vpack.c.b16 %v1617, %v1613
    %v1934 = vpack.c.b16 %v1618, %v1614
    %v1935 = vpack.c.b16 %v1619, %v1615
    %v1936 = vpack.c.b16 %v1624, %v1620
    %v1937 = vpack.c.b16 %v1625, %v1621
    %v1938 = vpack.c.b16 %v1626, %v1622
    %v1939 = vpack.c.b16 %v1627, %v1623
    %v1940 = vpack.c.b16 %v1632, %v1628
    %v1941 = vpack.c.b16 %v1633, %v1629
    %v1942 = vpack.c.b16 %v1634, %v1630
    %v1943 = vpack.c.b16 %v1635, %v1631
    %v1944 = vpack.c.b16 %v1640, %v1636
    %v1945 = vpack.c.b16 %v1641, %v1637
    %v1946 = vpack.c.b16 %v1642, %v1638
    %v1947 = vpack.c.b16 %v1643, %v1639
    %v1948 = vpack.c.b16 %v1648, %v1644
    %v1949 = vpack.c.b16 %v1649, %v1645
    %v1950 = vpack.c.b16 %v1650, %v1646
    %v1951 = vpack.c.b16 %v1651, %v1647
    %v1952 = vpack.c.b16 %v1656, %v1652
    %v1953 = vpack.c.b16 %v1657, %v1653
    %v1954 = vpack.c.b16 %v1658, %v1654
    %v1955 = vpack.c.b16 %v1659, %v1655
    %v1956 = vpack.c.b16 %v1664, %v1660
    %v1957 = vpack.c.b16 %v1665, %v1661
    %v1958 = vpack.c.b16 %v1666, %v1662
    %v1959 = vpack.c.b16 %v1667, %v1663
    %v1960 = vpack.c.b16 %v1672, %v1668
    %v1961 = vpack.c.b16 %v1673, %v1669
    %v1962 = vpack.c.b16 %v1674, %v1670
    %v1963 = vpack.c.b16 %v1675, %v1671
    %v1964 = vpack.c.b16 %v1680, %v1676
    %v1965 = vpack.c.b16 %v1681, %v1677
    %v1966 = vpack.c.b16 %v1682, %v1678
    %v1967 = vpack.c.b16 %v1683, %v1679
    %v1968 = vpack.c.b16 %v1688, %v1684
    %v1969 = vpack.c.b16 %v1689, %v1685
    %v1970 = vpack.c.b16 %v1690, %v1686
    %v1971 = vpack.c.b16 %v1691, %v1687
    %v1972 = vpack.c.b16 %v1696, %v1692
    %v1973 = vpack.c.b16 %v1697, %v1693
    %v1974 = vpack.c.b16 %v1698, %v1694
    %v1975 = vpack.c.b16 %v1699, %v1695
    %v1976 = vpack.c.b16 %v1704, %v1700
    %v1977 = vpack.c.b16 %v1705, %v1701
    %v1978 = vpack.c.b16 %v1706, %v1702
    %v1979 = vpack.c.b16 %v1707, %v1703
    %v1980 = vpack.c.b16 %v1712, %v1708
    %v1981 = vpack.c.b16 %v1713, %v1709
    %v1982 = vpack.c.b16 %v1714, %v1710
    %v1983 = vpack.c.b16 %v1715, %v1711
    %v1984 = vpack.c.b16 %v1720, %v1716
    %v1985 = vpack.c.b16 %v1721, %v1717
    %v1986 = vpack.c.b16 %v1722, %v1718
    %v1987 = vpack.c.b16 %v1723, %v1719
    %v1988 = vpack.c.b16 %v1728, %v1724
    %v1989 = vpack.c.b16 %v1729, %v1725
    %v1990 = vpack.c.b16 %v1730, %v1726
    %v1991 = vpack.c.b16 %v1731, %v1727
    %v1992 = vpack.c.b16 %v1736, %v1732
    %v1993 = vpack.c.b16 %v1737, %v1733
    %v1994 = vpack.c.b16 %v1738, %v1734
    %v1995 = vpack.c.b16 %v1739, %v1735
    %2252 = vmatprep.subr.bf16.mxu0 %v1769
    %2253 = vmatpush1.bf16.msra.mxu0 %v1768
    %2254 = vmatprep.subr.bf16.mxu0 %v1765
    %2255 = vmatpush1.bf16.msra.mxu0 %v1764
    %2256 = vmatprep.subr.bf16.mxu0 %v1761
    %2257 = vmatpush1.bf16.msra.mxu0 %v1760
    %2258 = vmatprep.subr.bf16.mxu0 %v1757
    %2259 = vmatpush1.bf16.msra.mxu0 %v1756
    %2260 = vmatprep.subr.bf16.mxu0 %v1753
    %2261 = vmatpush1.bf16.msra.mxu0 %v1752
    %2262 = vmatprep.subr.bf16.mxu0 %v1749
    %2263 = vmatpush1.bf16.msra.mxu0 %v1748
    %2264 = vmatprep.subr.bf16.mxu0 %v1745
    %2265 = vmatpush1.bf16.msra.mxu0 %v1744
    %2266 = vmatprep.subr.bf16.mxu0 %v1741
    %2267 = vmatpush1.bf16.msra.mxu0 %v1740
    %2268 = vmatprep.subr.bf16.mxu0 %v1801
    %2269 = vmatpush2.bf16.msra.mxu0 %v1800
    %2270 = vmatprep.subr.bf16.mxu0 %v1797
    %2271 = vmatpush2.bf16.msra.mxu0 %v1796
    %2272 = vmatprep.subr.bf16.mxu0 %v1793
    %2273 = vmatpush2.bf16.msra.mxu0 %v1792
    %2274 = vmatprep.subr.bf16.mxu0 %v1789
    %2275 = vmatpush2.bf16.msra.mxu0 %v1788
    %2276 = vmatprep.subr.bf16.mxu0 %v1785
    %2277 = vmatpush2.bf16.msra.mxu0 %v1784
    %2278 = vmatprep.subr.bf16.mxu0 %v1781
    %2279 = vmatpush2.bf16.msra.mxu0 %v1780
    %2280 = vmatprep.subr.bf16.mxu0 %v1777
    %2281 = vmatpush2.bf16.msra.mxu0 %v1776
    %2282 = vmatprep.subr.bf16.mxu0 %v1773
    %2283 = vmatpush2.bf16.msra.mxu0 %v1772
    %2284 = vmatprep.mubr.bf16.mxu0 %v688
    %2285 = vmatmul.mubr.bf16.gmra.mxu0 %v687
    %v2286 = vpop.f32.mrf.mxu0
    %v2287 = vadd.f32 %v955, %v2286
    %v2288 = vpop.f32.mrf.mxu0
    %v2289 = vadd.f32 %v959, %v2288
    %v2290 = vpop.f32.mrf.mxu0
    %v2291 = vpop.f32.mrf.mxu0
    %2292 = vdwg.mxu0
    %2293 = vmatprep.subr.bf16.mxu0 %v1833
    %2294 = vmatpush1.bf16.msra.mxu0 %v1832
    %2295 = vmatprep.subr.bf16.mxu0 %v1829
    %2296 = vmatpush1.bf16.msra.mxu0 %v1828
    %2297 = vmatprep.subr.bf16.mxu0 %v1825
    %2298 = vmatpush1.bf16.msra.mxu0 %v1824
    %2299 = vmatprep.subr.bf16.mxu0 %v1821
    %2300 = vmatpush1.bf16.msra.mxu0 %v1820
    %2301 = vmatprep.subr.bf16.mxu0 %v1817
    %2302 = vmatpush1.bf16.msra.mxu0 %v1816
    %2303 = vmatprep.subr.bf16.mxu0 %v1813
    %2304 = vmatpush1.bf16.msra.mxu0 %v1812
    %2305 = vmatprep.subr.bf16.mxu0 %v1809
    %2306 = vmatpush1.bf16.msra.mxu0 %v1808
    %2307 = vmatprep.subr.bf16.mxu0 %v1805
    %2308 = vmatpush1.bf16.msra.mxu0 %v1804
    %2309 = vmatprep.subr.bf16.mxu0 %v1865
    %2310 = vmatpush2.bf16.msra.mxu0 %v1864
    %2311 = vmatprep.subr.bf16.mxu0 %v1861
    %2312 = vmatpush2.bf16.msra.mxu0 %v1860
    %2313 = vmatprep.subr.bf16.mxu0 %v1857
    %2314 = vmatpush2.bf16.msra.mxu0 %v1856
    %2315 = vmatprep.subr.bf16.mxu0 %v1853
    %2316 = vmatpush2.bf16.msra.mxu0 %v1852
    %2317 = vmatprep.subr.bf16.mxu0 %v1849
    %2318 = vmatpush2.bf16.msra.mxu0 %v1848
    %2319 = vmatprep.subr.bf16.mxu0 %v1845
    %2320 = vmatpush2.bf16.msra.mxu0 %v1844
    %2321 = vmatprep.subr.bf16.mxu0 %v1841
    %2322 = vmatpush2.bf16.msra.mxu0 %v1840
    %2323 = vmatprep.subr.bf16.mxu0 %v1837
    %2324 = vmatpush2.bf16.msra.mxu0 %v1836
    %2325 = vmatprep.mubr.bf16.mxu0 %v690
    %2326 = vmatmul.mubr.bf16.gmra.mxu0 %v689
    %v2327 = vpop.f32.mrf.mxu0
    %v2328 = vadd.f32 %v2287, %v2327
    %v2329 = vpop.f32.mrf.mxu0
    %v2330 = vadd.f32 %v2289, %v2329
    %v2331 = vpop.f32.mrf.mxu0
    %v2332 = vpop.f32.mrf.mxu0
    %2333 = vdwg.mxu0
    %2334 = vmatprep.subr.bf16.mxu0 %v1897
    %2335 = vmatpush1.bf16.msra.mxu0 %v1896
    %2336 = vmatprep.subr.bf16.mxu0 %v1893
    %2337 = vmatpush1.bf16.msra.mxu0 %v1892
    %2338 = vmatprep.subr.bf16.mxu0 %v1889
    %2339 = vmatpush1.bf16.msra.mxu0 %v1888
    %2340 = vmatprep.subr.bf16.mxu0 %v1885
    %2341 = vmatpush1.bf16.msra.mxu0 %v1884
    %2342 = vmatprep.subr.bf16.mxu0 %v1881
    %2343 = vmatpush1.bf16.msra.mxu0 %v1880
    %2344 = vmatprep.subr.bf16.mxu0 %v1877
    %2345 = vmatpush1.bf16.msra.mxu0 %v1876
    %2346 = vmatprep.subr.bf16.mxu0 %v1873
    %2347 = vmatpush1.bf16.msra.mxu0 %v1872
    %2348 = vmatprep.subr.bf16.mxu0 %v1869
    %2349 = vmatpush1.bf16.msra.mxu0 %v1868
    %2350 = vmatprep.subr.bf16.mxu0 %v1929
    %2351 = vmatpush2.bf16.msra.mxu0 %v1928
    %2352 = vmatprep.subr.bf16.mxu0 %v1925
    %2353 = vmatpush2.bf16.msra.mxu0 %v1924
    %2354 = vmatprep.subr.bf16.mxu0 %v1921
    %2355 = vmatpush2.bf16.msra.mxu0 %v1920
    %2356 = vmatprep.subr.bf16.mxu0 %v1917
    %2357 = vmatpush2.bf16.msra.mxu0 %v1916
    %2358 = vmatprep.subr.bf16.mxu0 %v1913
    %2359 = vmatpush2.bf16.msra.mxu0 %v1912
    %2360 = vmatprep.subr.bf16.mxu0 %v1909
    %2361 = vmatpush2.bf16.msra.mxu0 %v1908
    %2362 = vmatprep.subr.bf16.mxu0 %v1905
    %2363 = vmatpush2.bf16.msra.mxu0 %v1904
    %2364 = vmatprep.subr.bf16.mxu0 %v1901
    %2365 = vmatpush2.bf16.msra.mxu0 %v1900
    %2366 = vmatprep.mubr.bf16.mxu0 %v692
    %2367 = vmatmul.mubr.bf16.gmra.mxu0 %v691
    %v2368 = vpop.f32.mrf.mxu0
    %v2369 = vadd.f32 %v2328, %v2368
    %v2370 = vpop.f32.mrf.mxu0
    %v2371 = vadd.f32 %v2330, %v2370
    %v2372 = vpop.f32.mrf.mxu0
    %v2373 = vpop.f32.mrf.mxu0
    %2374 = vdwg.mxu0
    %2375 = vmatprep.subr.bf16.mxu0 %v1961
    %2376 = vmatpush1.bf16.msra.mxu0 %v1960
    %2377 = vmatprep.subr.bf16.mxu0 %v1957
    %2378 = vmatpush1.bf16.msra.mxu0 %v1956
    %2379 = vmatprep.subr.bf16.mxu0 %v1953
    %2380 = vmatpush1.bf16.msra.mxu0 %v1952
    %2381 = vmatprep.subr.bf16.mxu0 %v1949
    %2382 = vmatpush1.bf16.msra.mxu0 %v1948
    %2383 = vmatprep.subr.bf16.mxu0 %v1945
    %2384 = vmatpush1.bf16.msra.mxu0 %v1944
    %2385 = vmatprep.subr.bf16.mxu0 %v1941
    %2386 = vmatpush1.bf16.msra.mxu0 %v1940
    %2387 = vmatprep.subr.bf16.mxu0 %v1937
    %2388 = vmatpush1.bf16.msra.mxu0 %v1936
    %2389 = vmatprep.subr.bf16.mxu0 %v1933
    %2390 = vmatpush1.bf16.msra.mxu0 %v1932
    %2391 = vmatprep.subr.bf16.mxu0 %v1993
    %2392 = vmatpush2.bf16.msra.mxu0 %v1992
    %2393 = vmatprep.subr.bf16.mxu0 %v1989
    %2394 = vmatpush2.bf16.msra.mxu0 %v1988
    %2395 = vmatprep.subr.bf16.mxu0 %v1985
    %2396 = vmatpush2.bf16.msra.mxu0 %v1984
    %2397 = vmatprep.subr.bf16.mxu0 %v1981
    %2398 = vmatpush2.bf16.msra.mxu0 %v1980
    %2399 = vmatprep.subr.bf16.mxu0 %v1977
    %2400 = vmatpush2.bf16.msra.mxu0 %v1976
    %2401 = vmatprep.subr.bf16.mxu0 %v1973
    %2402 = vmatpush2.bf16.msra.mxu0 %v1972
    %2403 = vmatprep.subr.bf16.mxu0 %v1969
    %2404 = vmatpush2.bf16.msra.mxu0 %v1968
    %2405 = vmatprep.subr.bf16.mxu0 %v1965
    %2406 = vmatpush2.bf16.msra.mxu0 %v1964
    %2407 = vmatprep.mubr.bf16.mxu0 %v694
    %2408 = vmatmul.mubr.bf16.gmra.mxu0 %v693
    %v2409 = vpop.f32.mrf.mxu0
    %v2410 = vadd.f32 %v2369, %v2409
    %v2411 = vpop.f32.mrf.mxu0
    %v2412 = vadd.f32 %v2371, %v2411
    %v2413 = vpop.f32.mrf.mxu0
    %v2414 = vpop.f32.mrf.mxu0
    %2415 = vdwg.mxu0
    %2416 = vmatprep.subr.bf16.mxu0 %v1771
    %2417 = vmatpush1.bf16.msra.mxu0 %v1770
    %2418 = vmatprep.subr.bf16.mxu0 %v1767
    %2419 = vmatpush1.bf16.msra.mxu0 %v1766
    %2420 = vmatprep.subr.bf16.mxu0 %v1763
    %2421 = vmatpush1.bf16.msra.mxu0 %v1762
    %2422 = vmatprep.subr.bf16.mxu0 %v1759
    %2423 = vmatpush1.bf16.msra.mxu0 %v1758
    %2424 = vmatprep.subr.bf16.mxu0 %v1755
    %2425 = vmatpush1.bf16.msra.mxu0 %v1754
    %2426 = vmatprep.subr.bf16.mxu0 %v1751
    %2427 = vmatpush1.bf16.msra.mxu0 %v1750
    %2428 = vmatprep.subr.bf16.mxu0 %v1747
    %2429 = vmatpush1.bf16.msra.mxu0 %v1746
    %2430 = vmatprep.subr.bf16.mxu0 %v1743
    %2431 = vmatpush1.bf16.msra.mxu0 %v1742
    %2432 = vmatprep.subr.bf16.mxu0 %v1803
    %2433 = vmatpush2.bf16.msra.mxu0 %v1802
    %2434 = vmatprep.subr.bf16.mxu0 %v1799
    %2435 = vmatpush2.bf16.msra.mxu0 %v1798
    %2436 = vmatprep.subr.bf16.mxu0 %v1795
    %2437 = vmatpush2.bf16.msra.mxu0 %v1794
    %2438 = vmatprep.subr.bf16.mxu0 %v1791
    %2439 = vmatpush2.bf16.msra.mxu0 %v1790
    %2440 = vmatprep.subr.bf16.mxu0 %v1787
    %2441 = vmatpush2.bf16.msra.mxu0 %v1786
    %2442 = vmatprep.subr.bf16.mxu0 %v1783
    %2443 = vmatpush2.bf16.msra.mxu0 %v1782
    %2444 = vmatprep.subr.bf16.mxu0 %v1779
    %2445 = vmatpush2.bf16.msra.mxu0 %v1778
    %2446 = vmatprep.subr.bf16.mxu0 %v1775
    %2447 = vmatpush2.bf16.msra.mxu0 %v1774
    %2448 = vmatprep.mubr.bf16.mxu0 %v688
    %2449 = vmatmul.mubr.bf16.gmra.mxu0 %v687
    %v2450 = vpop.f32.mrf.mxu0
    %v2451 = vadd.f32 %v963, %v2450
    %v2452 = vpop.f32.mrf.mxu0
    %v2453 = vadd.f32 %v967, %v2452
    %v2454 = vpop.f32.mrf.mxu0
    %v2455 = vpop.f32.mrf.mxu0
    %2456 = vdwg.mxu0
    %2457 = vmatprep.subr.bf16.mxu0 %v1835
    %2458 = vmatpush1.bf16.msra.mxu0 %v1834
    %2459 = vmatprep.subr.bf16.mxu0 %v1831
    %2460 = vmatpush1.bf16.msra.mxu0 %v1830
    %2461 = vmatprep.subr.bf16.mxu0 %v1827
    %2462 = vmatpush1.bf16.msra.mxu0 %v1826
    %2463 = vmatprep.subr.bf16.mxu0 %v1823
    %2464 = vmatpush1.bf16.msra.mxu0 %v1822
    %2465 = vmatprep.subr.bf16.mxu0 %v1819
    %2466 = vmatpush1.bf16.msra.mxu0 %v1818
    %2467 = vmatprep.subr.bf16.mxu0 %v1815
    %2468 = vmatpush1.bf16.msra.mxu0 %v1814
    %2469 = vmatprep.subr.bf16.mxu0 %v1811
    %2470 = vmatpush1.bf16.msra.mxu0 %v1810
    %2471 = vmatprep.subr.bf16.mxu0 %v1807
    %2472 = vmatpush1.bf16.msra.mxu0 %v1806
    %2473 = vmatprep.subr.bf16.mxu0 %v1867
    %2474 = vmatpush2.bf16.msra.mxu0 %v1866
    %2475 = vmatprep.subr.bf16.mxu0 %v1863
    %2476 = vmatpush2.bf16.msra.mxu0 %v1862
    %2477 = vmatprep.subr.bf16.mxu0 %v1859
    %2478 = vmatpush2.bf16.msra.mxu0 %v1858
    %2479 = vmatprep.subr.bf16.mxu0 %v1855
    %2480 = vmatpush2.bf16.msra.mxu0 %v1854
    %2481 = vmatprep.subr.bf16.mxu0 %v1851
    %2482 = vmatpush2.bf16.msra.mxu0 %v1850
    %2483 = vmatprep.subr.bf16.mxu0 %v1847
    %2484 = vmatpush2.bf16.msra.mxu0 %v1846
    %2485 = vmatprep.subr.bf16.mxu0 %v1843
    %2486 = vmatpush2.bf16.msra.mxu0 %v1842
    %2487 = vmatprep.subr.bf16.mxu0 %v1839
    %2488 = vmatpush2.bf16.msra.mxu0 %v1838
    %2489 = vmatprep.mubr.bf16.mxu0 %v690
    %2490 = vmatmul.mubr.bf16.gmra.mxu0 %v689
    %v2491 = vpop.f32.mrf.mxu0
    %v2492 = vadd.f32 %v2451, %v2491
    %v2493 = vpop.f32.mrf.mxu0
    %v2494 = vadd.f32 %v2453, %v2493
    %v2495 = vpop.f32.mrf.mxu0
    %v2496 = vpop.f32.mrf.mxu0
    %2497 = vdwg.mxu0
    %2498 = vmatprep.subr.bf16.mxu0 %v1899
    %2499 = vmatpush1.bf16.msra.mxu0 %v1898
    %2500 = vmatprep.subr.bf16.mxu0 %v1895
    %2501 = vmatpush1.bf16.msra.mxu0 %v1894
    %2502 = vmatprep.subr.bf16.mxu0 %v1891
    %2503 = vmatpush1.bf16.msra.mxu0 %v1890
    %2504 = vmatprep.subr.bf16.mxu0 %v1887
    %2505 = vmatpush1.bf16.msra.mxu0 %v1886
    %2506 = vmatprep.subr.bf16.mxu0 %v1883
    %2507 = vmatpush1.bf16.msra.mxu0 %v1882
    %2508 = vmatprep.subr.bf16.mxu0 %v1879
    %2509 = vmatpush1.bf16.msra.mxu0 %v1878
    %2510 = vmatprep.subr.bf16.mxu0 %v1875
    %2511 = vmatpush1.bf16.msra.mxu0 %v1874
    %2512 = vmatprep.subr.bf16.mxu0 %v1871
    %2513 = vmatpush1.bf16.msra.mxu0 %v1870
    %2514 = vmatprep.subr.bf16.mxu0 %v1931
    %2515 = vmatpush2.bf16.msra.mxu0 %v1930
    %2516 = vmatprep.subr.bf16.mxu0 %v1927
    %2517 = vmatpush2.bf16.msra.mxu0 %v1926
    %2518 = vmatprep.subr.bf16.mxu0 %v1923
    %2519 = vmatpush2.bf16.msra.mxu0 %v1922
    %2520 = vmatprep.subr.bf16.mxu0 %v1919
    %2521 = vmatpush2.bf16.msra.mxu0 %v1918
    %2522 = vmatprep.subr.bf16.mxu0 %v1915
    %2523 = vmatpush2.bf16.msra.mxu0 %v1914
    %2524 = vmatprep.subr.bf16.mxu0 %v1911
    %2525 = vmatpush2.bf16.msra.mxu0 %v1910
    %2526 = vmatprep.subr.bf16.mxu0 %v1907
    %2527 = vmatpush2.bf16.msra.mxu0 %v1906
    %2528 = vmatprep.subr.bf16.mxu0 %v1903
    %2529 = vmatpush2.bf16.msra.mxu0 %v1902
    %2530 = vmatprep.mubr.bf16.mxu0 %v692
    %2531 = vmatmul.mubr.bf16.gmra.mxu0 %v691
    %v2532 = vpop.f32.mrf.mxu0
    %v2533 = vadd.f32 %v2492, %v2532
    %v2534 = vpop.f32.mrf.mxu0
    %v2535 = vadd.f32 %v2494, %v2534
    %v2536 = vpop.f32.mrf.mxu0
    %v2537 = vpop.f32.mrf.mxu0
    %2538 = vdwg.mxu0
    %2539 = vmatprep.subr.bf16.mxu0 %v1963
    %2540 = vmatpush1.bf16.msra.mxu0 %v1962
    %2541 = vmatprep.subr.bf16.mxu0 %v1959
    %2542 = vmatpush1.bf16.msra.mxu0 %v1958
    %2543 = vmatprep.subr.bf16.mxu0 %v1955
    %2544 = vmatpush1.bf16.msra.mxu0 %v1954
    %2545 = vmatprep.subr.bf16.mxu0 %v1951
    %2546 = vmatpush1.bf16.msra.mxu0 %v1950
    %2547 = vmatprep.subr.bf16.mxu0 %v1947
    %2548 = vmatpush1.bf16.msra.mxu0 %v1946
    %2549 = vmatprep.subr.bf16.mxu0 %v1943
    %2550 = vmatpush1.bf16.msra.mxu0 %v1942
    %2551 = vmatprep.subr.bf16.mxu0 %v1939
    %2552 = vmatpush1.bf16.msra.mxu0 %v1938
    %2553 = vmatprep.subr.bf16.mxu0 %v1935
    %2554 = vmatpush1.bf16.msra.mxu0 %v1934
    %2555 = vmatprep.subr.bf16.mxu0 %v1995
    %2556 = vmatpush2.bf16.msra.mxu0 %v1994
    %2557 = vmatprep.subr.bf16.mxu0 %v1991
    %2558 = vmatpush2.bf16.msra.mxu0 %v1990
    %2559 = vmatprep.subr.bf16.mxu0 %v1987
    %2560 = vmatpush2.bf16.msra.mxu0 %v1986
    %2561 = vmatprep.subr.bf16.mxu0 %v1983
    %2562 = vmatpush2.bf16.msra.mxu0 %v1982
    %2563 = vmatprep.subr.bf16.mxu0 %v1979
    %2564 = vmatpush2.bf16.msra.mxu0 %v1978
    %2565 = vmatprep.subr.bf16.mxu0 %v1975
    %2566 = vmatpush2.bf16.msra.mxu0 %v1974
    %2567 = vmatprep.subr.bf16.mxu0 %v1971
    %2568 = vmatpush2.bf16.msra.mxu0 %v1970
    %2569 = vmatprep.subr.bf16.mxu0 %v1967
    %2570 = vmatpush2.bf16.msra.mxu0 %v1966
    %2571 = vmatprep.mubr.bf16.mxu0 %v694
    %2572 = vmatmul.mubr.bf16.gmra.mxu0 %v693
    %v2573 = vpop.f32.mrf.mxu0
    %v2574 = vadd.f32 %v2533, %v2573
    %v2575 = vpop.f32.mrf.mxu0
    %v2576 = vadd.f32 %v2535, %v2575
    %v2577 = vpop.f32.mrf.mxu0
    %v2578 = vpop.f32.mrf.mxu0
    %2579 = vdwg.mxu0
    %vm2580 = vcmp.gt.f32.partialorder %v2410, 0.0
    %vm2581 = vcmp.gt.f32.partialorder %v2412, 0.0
    %vm2582 = vcmp.gt.f32.partialorder %v2574, 0.0
    %vm2583 = vcmp.gt.f32.partialorder %v2576, 0.0
    %v2584 = vmul.f32 %v2410, 0.01
    %v2585 = vmul.f32 %v2412, 0.01
    %v2586 = vmul.f32 %v2574, 0.01
    %v2587 = vmul.f32 %v2576, 0.01
    %v2588 = vsel %vm2580, %v2410, %v2584
    %v2589 = vsel %vm2581, %v2412, %v2585
    %v2590 = vsel %vm2582, %v2574, %v2586
    %v2591 = vsel %vm2583, %v2576, %v2587
    %v2593 = vlaneseq
    %v2594 = vshrl.u32 %v2593, 7
    %v2595 = vsub.s32 0, %v2594
    %v2596 = vrot.slane %v71, %v2595
    %v2597 = vlaneseq
    %v2598 = vshrl.u32 %v2597, 7
    %v2599 = vsub.s32 1, %v2598
    %v2600 = vrot.slane %v71, %v2599
    %v2601 = vlaneseq
    %v2602 = vshrl.u32 %v2601, 7
    %v2603 = vsub.s32 2, %v2602
    %v2604 = vrot.slane %v71, %v2603
    %v2605 = vlaneseq
    %v2606 = vshrl.u32 %v2605, 7
    %v2607 = vsub.s32 3, %v2606
    %v2608 = vrot.slane %v71, %v2607
    %v2613 = vmul.f32 %v2588, %v2596
    %v2614 = vmul.f32 %v2589, %v2600
    %v2615 = vmul.f32 %v2590, %v2604
    %v2616 = vmul.f32 %v2591, %v2608
    %vm2617 = vcmask 1041408
    %v2618 = vsel %vm2617, %v2613, 0.0
    %v2619 = vsel %vm2617, %v2614, 0.0
    %v2620 = vadd.f32 %v2618, %v2619
    %v2621 = vsel %vm2617, %v2615, 0.0
    %v2622 = vadd.f32 %v2620, %v2621
    %v2623 = vsel %vm2617, %v2616, 0.0
    %v2624 = vadd.f32 %v2622, %v2623
    %2625 = vadd.xlane.f32.xlu0 %v2624
    %v2626 = vpop.xlane.xlu0 %2625
    %s2627 = sld [smem:[#allocation3]]
    %v2628 = vstv %s2627
    %v2629 = vadd.f32 %v2626, %v2628
    %vm2630 = vcmask 1024
    %2631 = vst.msk [vmem:[%s5] sm:$0x3] %vm2630, %v2629
    // Predicated region
    $region38: #{tpu_custom_call.1} parent=1 // pred_check
      _
    $region39: #{tpu_custom_call.1} parent=1 // pred_check_branch
      %2633 = sbr.rel (0) target = $region41
    $region40: #{tpu_custom_call.1} parent=1 // pred_region
      _
    $region41: #{tpu_custom_call.1} parent=1 // pred_fallthru
      _
    // Predicated region
    $region42: #{tpu_custom_call.1} parent=1 // pred_check
      _
    $region43: #{tpu_custom_call.1} parent=1 // pred_check_branch
      %2635 = sbr.rel (0) target = $region45
    $region44: #{tpu_custom_call.1} parent=1 // pred_region
      _
    $region45: #{tpu_custom_call.1} parent=1 // pred_fallthru
      _
    %2636 = vsyncpa [#allocation5], 1
    %2637 = vsyncpa [#allocation7], 1

</llo_original>
